<compile_context>
chip_gen: v5e
topology: v5e:2x2
jax: 0.10.0
libtpu: 0.0.40
codegen_flags: <defaults>
</compile_context>

<pallas_src>
import math
import jax
import jax.numpy as jnp
from jax import lax
from jax.experimental import pallas as pl
from jax.experimental.pallas import tpu as pltpu

# hyperparameters implied by the module (hp.*) -- small synthetic sizes
E = 32           # hp.embedding_size
H = 4            # num_heads
D = E // H       # per-head dim
DFF = 64         # hp.dim_feedforward
EPS = 1e-5       # nn.LayerNorm default eps
NEG = -1e30      # additive mask value for cross-batch attention entries
SCALE = 1.0 / math.sqrt(D)

# ---- unified parameter slab layout (all column starts are 128-lane aligned) ----
LANE = 128
C_FUSED = 0 * LANE     # width 5E = 160 : [sa_wq | sa_wk | sa_wv | ca_wk | ca_wv]
C_SAO   = 2 * LANE     # width E   : self-attn out-proj
C_CAQ   = 3 * LANE     # width E   : cross-attn q-proj
C_CAO   = 4 * LANE     # width E   : cross-attn out-proj
C_FF1   = 5 * LANE     # width DFF : FFN linear_1
C_FF2   = 6 * LANE     # width E   : FFN linear_2 (DFF input rows)
C_TOT   = 7 * LANE     # 896 columns total

R_BIAS = 64            # single bias row; bias for each segment sits at the same
                       # column offset as its weight (so bias adds need no rotate)
R_LN1  = 65            # rows 65..70 : ln1_w, ln1_b, ln2_w, ln2_b, ln3_w, ln3_b (cols 0:E)
R_LN2  = 67
R_LN3  = 69
R_TOT  = 72            # padded to a multiple of 8 sublanes


def make_decoder_kernel(B, S, T):
    N = B * S            # flattened target rows
    M = B * T            # flattened memory rows

    def batch_ids(shape, axis, per):
        """Batch id of each row/col index (index // per), built from in-kernel iota."""
        iota = lax.broadcasted_iota(jnp.int32, shape, axis)
        if per & (per - 1) == 0:                       # power of two -> shift
            return jnp.right_shift(iota, per.bit_length() - 1)
        return iota // per  # TODO(synk): non-power-of-two seq lens not exercised here

    def kernel(xm_ref, p_ref, out_ref):
        xm = xm_ref[...]                               # (N + M, E) f32
        x = xm[0:N, :]                                 # residual base (target rows)

        # Block-diagonal additive masks, built in-kernel (no DMA, no O(N^2) input).
        self_mask = jnp.where(
            batch_ids((N, N), 0, S) == batch_ids((N, N), 1, S),
            jnp.float32(0.0), jnp.float32(NEG))
        cross_mask = jnp.where(
            batch_ids((N, M), 0, S) == batch_ids((N, M), 1, T),
            jnp.float32(0.0), jnp.float32(NEG))

        def dot_bf16(a, b):
            return jnp.dot(a.astype(jnp.bfloat16), b.astype(jnp.bfloat16),
                           preferred_element_type=jnp.float32)

        def dot_nt_bf16(a, b):
            # a @ b.T with the transpose folded into the matmul operand feed.
            return lax.dot_general(a.astype(jnp.bfloat16), b.astype(jnp.bfloat16),
                                   dimension_numbers=(((1,), (1,)), ((), ())),
                                   preferred_element_type=jnp.float32)

        def layernorm(z, r):
            g = p_ref[r:r + 1, 0:E]
            b = p_ref[r + 1:r + 2, 0:E]
            mu = jnp.mean(z, axis=-1, keepdims=True)
            var = jnp.mean((z - mu) ** 2, axis=-1, keepdims=True)   # biased, like PyTorch
            return (z - mu) * lax.rsqrt(var + EPS) * g + b

        def mha(q, k, v, wo, bo, mask):
            """q already scaled; heads are contiguous D-wide column chunks."""
            heads = []
            for h in range(H):                         # static unroll, H = 4
                sl = slice(h * D, (h + 1) * D)
                s = dot_nt_bf16(q[:, sl], k[:, sl]) + mask
                s = s - jnp.max(s, axis=-1, keepdims=True)
                e = jnp.exp(s)
                p_attn = e * pl.reciprocal(jnp.sum(e, axis=-1, keepdims=True), approx=True)
                heads.append(dot_bf16(p_attn, v[:, sl]))
            o = jnp.concatenate(heads, axis=-1)        # (rows, E)
            return dot_bf16(o, wo) + bo

        # ---- fused projection: SA QKV on x rows + CA KV on memory rows -------------
        proj = (dot_bf16(xm, p_ref[0:E, C_FUSED:C_FUSED + 5 * E])
                + p_ref[R_BIAS:R_BIAS + 1, C_FUSED:C_FUSED + 5 * E])   # (N+M, 5E)
        q = proj[0:N, 0:E] * SCALE
        k = proj[0:N, E:2 * E]
        v = proj[0:N, 2 * E:3 * E]
        kc = proj[N:, 3 * E:4 * E]
        vc = proj[N:, 4 * E:5 * E]

        # ---- self-attention + residual + norm_1 (dropout_1 = identity) -------------
        sa = mha(q, k, v,
                 p_ref[0:E, C_SAO:C_SAO + E],
                 p_ref[R_BIAS:R_BIAS + 1, C_SAO:C_SAO + E],
                 self_mask)
        x = layernorm(x + sa, R_LN1)

        # ---- cross-attention with memory + residual + norm_2 ------------------------
        qc = (dot_bf16(x, p_ref[0:E, C_CAQ:C_CAQ + E])
              + p_ref[R_BIAS:R_BIAS + 1, C_CAQ:C_CAQ + E]) * SCALE
        ca = mha(qc, kc, vc,
                 p_ref[0:E, C_CAO:C_CAO + E],
                 p_ref[R_BIAS:R_BIAS + 1, C_CAO:C_CAO + E],
                 cross_mask)
        x = layernorm(x + ca, R_LN2)

        # ---- feed-forward (linear -> ReLU -> linear) + residual + norm_3 ------------
        h1 = (dot_bf16(x, p_ref[0:E, C_FF1:C_FF1 + DFF])
              + p_ref[R_BIAS:R_BIAS + 1, C_FF1:C_FF1 + DFF])
        h1 = jnp.maximum(h1, 0.0)
        h2 = (dot_bf16(h1, p_ref[0:DFF, C_FF2:C_FF2 + E])
              + p_ref[R_BIAS:R_BIAS + 1, C_FF2:C_FF2 + E])
        x = layernorm(x + h2, R_LN3)

        out_ref[...] = x.astype(out_ref.dtype)

    return kernel


@jax.jit
def decoder_block(x, memory, param_slab):
    B, S, _ = x.shape
    T = memory.shape[1]

    # Row-stack target and memory activations: one input DMA, and the fused
    # SA-QKV / CA-KV projection applies to it directly.
    xm = jnp.concatenate([x.reshape(B * S, E), memory.reshape(B * T, E)], axis=0)

    vmem = pl.BlockSpec(memory_space=pltpu.MemorySpace.VMEM)
    out2d = pl.pallas_call(
        make_decoder_kernel(B, S, T),
        out_shape=jax.ShapeDtypeStruct((B * S, E), jnp.float32),
        in_specs=[vmem, vmem],
        out_specs=vmem,
        # No grid at this tiny size (nothing to shard / pipeline); a scaled-up
        # version would add a "parallel" batch axis (megacore on v7x) and set
        # vmem_limit_bytes explicitly.
    )(xm, param_slab)

    return out2d.reshape(B, S, E)


def init_params(key):
    """Deterministic synthetic parameters. Weights stored as (in, out); biases (1, out)."""
    p = {}
    keys = jax.random.split(key, 20)
    ki = iter(keys)

    def w(shape):
        return 0.02 * jax.random.normal(next(ki), shape, dtype=jnp.float32)

    def b(n):
        return 0.01 * jax.random.normal(next(ki), (1, n), dtype=jnp.float32)

    for pref in ("sa", "ca"):
        p[f"{pref}_wq"] = w((E, E)); p[f"{pref}_wk"] = w((E, E)); p[f"{pref}_wv"] = w((E, E))
        p[f"{pref}_bq"] = b(E);      p[f"{pref}_bk"] = b(E);      p[f"{pref}_bv"] = b(E)
        p[f"{pref}_wo"] = w((E, E)); p[f"{pref}_bo"] = b(E)

    for i in (1, 2, 3):
        p[f"ln{i}_w"] = jnp.ones((1, E), dtype=jnp.float32)
        p[f"ln{i}_b"] = jnp.zeros((1, E), dtype=jnp.float32)

    p["w1"] = w((E, DFF)); p["b1"] = b(DFF)
    p["w2"] = w((DFF, E)); p["b2"] = b(E)
    return p


def pack_params(p):
    """Pack all 26 tensors into ONE (72, 896) f32 slab with 128-lane-aligned segments."""
    P = jnp.zeros((R_TOT, C_TOT), dtype=jnp.float32)

    w_fused = jnp.concatenate(
        [p["sa_wq"], p["sa_wk"], p["sa_wv"], p["ca_wk"], p["ca_wv"]], axis=1)   # (E, 160)
    b_fused = jnp.concatenate(
        [p["sa_bq"], p["sa_bk"], p["sa_bv"], p["ca_bk"], p["ca_bv"]], axis=1)   # (1, 160)

    P = P.at[0:E, C_FUSED:C_FUSED + 5 * E].set(w_fused)
    P = P.at[0:E, C_SAO:C_SAO + E].set(p["sa_wo"])
    P = P.at[0:E, C_CAQ:C_CAQ + E].set(p["ca_wq"])
    P = P.at[0:E, C_CAO:C_CAO + E].set(p["ca_wo"])
    P = P.at[0:E, C_FF1:C_FF1 + DFF].set(p["w1"])
    P = P.at[0:DFF, C_FF2:C_FF2 + E].set(p["w2"])

    P = P.at[R_BIAS:R_BIAS + 1, C_FUSED:C_FUSED + 5 * E].set(b_fused)
    P = P.at[R_BIAS:R_BIAS + 1, C_SAO:C_SAO + E].set(p["sa_bo"])
    P = P.at[R_BIAS:R_BIAS + 1, C_CAQ:C_CAQ + E].set(p["ca_bq"])
    P = P.at[R_BIAS:R_BIAS + 1, C_CAO:C_CAO + E].set(p["ca_bo"])
    P = P.at[R_BIAS:R_BIAS + 1, C_FF1:C_FF1 + DFF].set(p["b1"])
    P = P.at[R_BIAS:R_BIAS + 1, C_FF2:C_FF2 + E].set(p["b2"])

    P = P.at[R_LN1:R_LN1 + 2, 0:E].set(jnp.concatenate([p["ln1_w"], p["ln1_b"]], axis=0))
    P = P.at[R_LN2:R_LN2 + 2, 0:E].set(jnp.concatenate([p["ln2_w"], p["ln2_b"]], axis=0))
    P = P.at[R_LN3:R_LN3 + 2, 0:E].set(jnp.concatenate([p["ln3_w"], p["ln3_b"]], axis=0))
    return P


if __name__ == "__main__":
    key = jax.random.PRNGKey(0)
    k_x, k_m, k_p = jax.random.split(key, 3)

    B, S, T = 2, 8, 8
    x = jax.random.normal(k_x, (B, S, E), dtype=jnp.float32)
    memory = jax.random.normal(k_m, (B, T, E), dtype=jnp.float32)
    params = init_params(k_p)
    slab = pack_params(params)

    out = decoder_block(x, memory, slab)
    jax.block_until_ready(out)
    assert out.shape == (B, S, E)
    assert bool(jnp.all(jnp.isfinite(out)))
    print("KERNEL_OK")
</pallas_src>

<mosaic_0001>
module attributes {stable_mosaic.version = 11 : i64} {
  func.func @kernel(%arg0: memref<32x32xf32, #tpu.memory_space<vmem>>, %arg1: memref<72x896xf32, #tpu.memory_space<vmem>>, %arg2: memref<16x32xf32, #tpu.memory_space<vmem>>) attributes {dimension_semantics = [], scalar_prefetch = 0 : i64, scratch_operands = 0 : i64, tpu.core_type = #tpu.core_type<tc>} {
    %c0 = arith.constant 0 : index
    %c0_0 = arith.constant 0 : index
    %0 = vector.load %arg0[%c0, %c0_0] : memref<32x32xf32, #tpu.memory_space<vmem>>, vector<32x32xf32>
    %1 = vector.extract_strided_slice %0 {offsets = [0, 0], sizes = [16, 32], strides = [1, 1]} : vector<32x32xf32> to vector<16x32xf32>
    %2 = tpu.iota {dimensions = array<i32: 0>} : vector<16x16xi32>
    %c3_i32 = arith.constant 3 : i32
    %3 = vector.broadcast %c3_i32 : i32 to vector<16x16xi32>
    %4 = arith.shrsi %2, %3 : vector<16x16xi32>
    %5 = tpu.iota {dimensions = array<i32: 1>} : vector<16x16xi32>
    %c3_i32_1 = arith.constant 3 : i32
    %6 = vector.broadcast %c3_i32_1 : i32 to vector<16x16xi32>
    %7 = arith.shrsi %5, %6 : vector<16x16xi32>
    %8 = arith.cmpi eq, %4, %7 : vector<16x16xi32>
    %cst = arith.constant 0.000000e+00 : f32
    %cst_2 = arith.constant -1.000000e+30 : f32
    %9 = vector.broadcast %cst : f32 to vector<16x16xf32>
    %10 = vector.broadcast %cst_2 : f32 to vector<16x16xf32>
    %11 = arith.select %8, %9, %10 : vector<16x16xi1>, vector<16x16xf32>
    %12 = tpu.iota {dimensions = array<i32: 0>} : vector<16x16xi32>
    %c3_i32_3 = arith.constant 3 : i32
    %13 = vector.broadcast %c3_i32_3 : i32 to vector<16x16xi32>
    %14 = arith.shrsi %12, %13 : vector<16x16xi32>
    %15 = tpu.iota {dimensions = array<i32: 1>} : vector<16x16xi32>
    %c3_i32_4 = arith.constant 3 : i32
    %16 = vector.broadcast %c3_i32_4 : i32 to vector<16x16xi32>
    %17 = arith.shrsi %15, %16 : vector<16x16xi32>
    %18 = arith.cmpi eq, %14, %17 : vector<16x16xi32>
    %cst_5 = arith.constant 0.000000e+00 : f32
    %cst_6 = arith.constant -1.000000e+30 : f32
    %19 = vector.broadcast %cst_5 : f32 to vector<16x16xf32>
    %20 = vector.broadcast %cst_6 : f32 to vector<16x16xf32>
    %21 = arith.select %18, %19, %20 : vector<16x16xi1>, vector<16x16xf32>
    %c0_7 = arith.constant 0 : index
    %c0_8 = arith.constant 0 : index
    %22 = vector.load %arg1[%c0_7, %c0_8] : memref<72x896xf32, #tpu.memory_space<vmem>>, vector<32x160xf32>
    %23 = arith.truncf %0 : vector<32x32xf32> to vector<32x32xbf16>
    %24 = arith.truncf %22 : vector<32x160xf32> to vector<32x160xbf16>
    %cst_9 = arith.constant dense<0.000000e+00> : vector<32x160xf32>
    %25 = tpu.matmul %23, %24, %cst_9 {dimension_numbers = #tpu.dot_dimension_numbers<[1], [0], [0], [1], [0, 0, 1, 1], [], []>} : vector<32x32xbf16>, vector<32x160xbf16>, vector<32x160xf32> -> vector<32x160xf32>
    %c64 = arith.constant 64 : index
    %c0_10 = arith.constant 0 : index
    %26 = vector.load %arg1[%c64, %c0_10] : memref<72x896xf32, #tpu.memory_space<vmem>>, vector<1x160xf32>
    %27 = vector.broadcast %26 : vector<1x160xf32> to vector<32x160xf32>
    %28 = arith.addf %25, %27 : vector<32x160xf32>
    %29 = vector.extract_strided_slice %28 {offsets = [0, 0], sizes = [16, 32], strides = [1, 1]} : vector<32x160xf32> to vector<16x32xf32>
    %cst_11 = arith.constant 0.353553385 : f32
    %30 = vector.broadcast %cst_11 : f32 to vector<16x32xf32>
    %31 = arith.mulf %29, %30 : vector<16x32xf32>
    %32 = vector.extract_strided_slice %28 {offsets = [0, 32], sizes = [16, 32], strides = [1, 1]} : vector<32x160xf32> to vector<16x32xf32>
    %33 = vector.extract_strided_slice %28 {offsets = [0, 64], sizes = [16, 32], strides = [1, 1]} : vector<32x160xf32> to vector<16x32xf32>
    %34 = vector.extract_strided_slice %28 {offsets = [16, 96], sizes = [16, 32], strides = [1, 1]} : vector<32x160xf32> to vector<16x32xf32>
    %35 = vector.extract_strided_slice %28 {offsets = [16, 128], sizes = [16, 32], strides = [1, 1]} : vector<32x160xf32> to vector<16x32xf32>
    %c0_12 = arith.constant 0 : index
    %c256 = arith.constant 256 : index
    %36 = vector.load %arg1[%c0_12, %c256] : memref<72x896xf32, #tpu.memory_space<vmem>>, vector<32x32xf32>
    %c64_13 = arith.constant 64 : index
    %c256_14 = arith.constant 256 : index
    %37 = vector.load %arg1[%c64_13, %c256_14] : memref<72x896xf32, #tpu.memory_space<vmem>>, vector<1x32xf32>
    %38 = vector.extract_strided_slice %31 {offsets = [0, 0], sizes = [16, 8], strides = [1, 1]} : vector<16x32xf32> to vector<16x8xf32>
    %39 = vector.extract_strided_slice %32 {offsets = [0, 0], sizes = [16, 8], strides = [1, 1]} : vector<16x32xf32> to vector<16x8xf32>
    %40 = arith.truncf %38 : vector<16x8xf32> to vector<16x8xbf16>
    %41 = arith.truncf %39 : vector<16x8xf32> to vector<16x8xbf16>
    %cst_15 = arith.constant dense<0.000000e+00> : vector<16x16xf32>
    %42 = tpu.matmul %40, %41, %cst_15 {dimension_numbers = #tpu.dot_dimension_numbers<[1], [1], [0], [0], [0, 0, 1, 0], [], []>} : vector<16x8xbf16>, vector<16x8xbf16>, vector<16x16xf32> -> vector<16x16xf32>
    %43 = arith.addf %42, %11 : vector<16x16xf32>
    %cst_16 = arith.constant dense<0xFF800000> : vector<16xf32>
    %44 = vector.multi_reduction <maximumf>, %43, %cst_16 [1] : vector<16x16xf32> to vector<16xf32>
    %45 = vector.shape_cast %44 : vector<16xf32> to vector<16x1xf32>
    %46 = vector.broadcast %45 : vector<16x1xf32> to vector<16x16xf32>
    %47 = arith.subf %43, %46 : vector<16x16xf32>
    %48 = math.exp %47 : vector<16x16xf32>
    %cst_17 = arith.constant dense<0.000000e+00> : vector<16xf32>
    %49 = vector.multi_reduction <add>, %48, %cst_17 [1] : vector<16x16xf32> to vector<16xf32>
    %50 = vector.shape_cast %49 : vector<16xf32> to vector<16x1xf32>
    %51 = tpu.reciprocal %50 {approx = true} : vector<16x1xf32> -> vector<16x1xf32>
    %52 = vector.broadcast %51 : vector<16x1xf32> to vector<16x16xf32>
    %53 = arith.mulf %48, %52 : vector<16x16xf32>
    %54 = vector.extract_strided_slice %33 {offsets = [0, 0], sizes = [16, 8], strides = [1, 1]} : vector<16x32xf32> to vector<16x8xf32>
    %55 = arith.truncf %53 : vector<16x16xf32> to vector<16x16xbf16>
    %56 = arith.truncf %54 : vector<16x8xf32> to vector<16x8xbf16>
    %cst_18 = arith.constant dense<0.000000e+00> : vector<16x8xf32>
    %57 = tpu.matmul %55, %56, %cst_18 {dimension_numbers = #tpu.dot_dimension_numbers<[1], [0], [0], [1], [0, 0, 1, 1], [], []>} : vector<16x16xbf16>, vector<16x8xbf16>, vector<16x8xf32> -> vector<16x8xf32>
    %58 = vector.extract_strided_slice %31 {offsets = [0, 8], sizes = [16, 8], strides = [1, 1]} : vector<16x32xf32> to vector<16x8xf32>
    %59 = vector.extract_strided_slice %32 {offsets = [0, 8], sizes = [16, 8], strides = [1, 1]} : vector<16x32xf32> to vector<16x8xf32>
    %60 = arith.truncf %58 : vector<16x8xf32> to vector<16x8xbf16>
    %61 = arith.truncf %59 : vector<16x8xf32> to vector<16x8xbf16>
    %cst_19 = arith.constant dense<0.000000e+00> : vector<16x16xf32>
    %62 = tpu.matmul %60, %61, %cst_19 {dimension_numbers = #tpu.dot_dimension_numbers<[1], [1], [0], [0], [0, 0, 1, 0], [], []>} : vector<16x8xbf16>, vector<16x8xbf16>, vector<16x16xf32> -> vector<16x16xf32>
    %63 = arith.addf %62, %11 : vector<16x16xf32>
    %cst_20 = arith.constant dense<0xFF800000> : vector<16xf32>
    %64 = vector.multi_reduction <maximumf>, %63, %cst_20 [1] : vector<16x16xf32> to vector<16xf32>
    %65 = vector.shape_cast %64 : vector<16xf32> to vector<16x1xf32>
    %66 = vector.broadcast %65 : vector<16x1xf32> to vector<16x16xf32>
    %67 = arith.subf %63, %66 : vector<16x16xf32>
    %68 = math.exp %67 : vector<16x16xf32>
    %cst_21 = arith.constant dense<0.000000e+00> : vector<16xf32>
    %69 = vector.multi_reduction <add>, %68, %cst_21 [1] : vector<16x16xf32> to vector<16xf32>
    %70 = vector.shape_cast %69 : vector<16xf32> to vector<16x1xf32>
    %71 = tpu.reciprocal %70 {approx = true} : vector<16x1xf32> -> vector<16x1xf32>
    %72 = vector.broadcast %71 : vector<16x1xf32> to vector<16x16xf32>
    %73 = arith.mulf %68, %72 : vector<16x16xf32>
    %74 = vector.extract_strided_slice %33 {offsets = [0, 8], sizes = [16, 8], strides = [1, 1]} : vector<16x32xf32> to vector<16x8xf32>
    %75 = arith.truncf %73 : vector<16x16xf32> to vector<16x16xbf16>
    %76 = arith.truncf %74 : vector<16x8xf32> to vector<16x8xbf16>
    %cst_22 = arith.constant dense<0.000000e+00> : vector<16x8xf32>
    %77 = tpu.matmul %75, %76, %cst_22 {dimension_numbers = #tpu.dot_dimension_numbers<[1], [0], [0], [1], [0, 0, 1, 1], [], []>} : vector<16x16xbf16>, vector<16x8xbf16>, vector<16x8xf32> -> vector<16x8xf32>
    %78 = vector.extract_strided_slice %31 {offsets = [0, 16], sizes = [16, 8], strides = [1, 1]} : vector<16x32xf32> to vector<16x8xf32>
    %79 = vector.extract_strided_slice %32 {offsets = [0, 16], sizes = [16, 8], strides = [1, 1]} : vector<16x32xf32> to vector<16x8xf32>
    %80 = arith.truncf %78 : vector<16x8xf32> to vector<16x8xbf16>
    %81 = arith.truncf %79 : vector<16x8xf32> to vector<16x8xbf16>
    %cst_23 = arith.constant dense<0.000000e+00> : vector<16x16xf32>
    %82 = tpu.matmul %80, %81, %cst_23 {dimension_numbers = #tpu.dot_dimension_numbers<[1], [1], [0], [0], [0, 0, 1, 0], [], []>} : vector<16x8xbf16>, vector<16x8xbf16>, vector<16x16xf32> -> vector<16x16xf32>
    %83 = arith.addf %82, %11 : vector<16x16xf32>
    %cst_24 = arith.constant dense<0xFF800000> : vector<16xf32>
    %84 = vector.multi_reduction <maximumf>, %83, %cst_24 [1] : vector<16x16xf32> to vector<16xf32>
    %85 = vector.shape_cast %84 : vector<16xf32> to vector<16x1xf32>
    %86 = vector.broadcast %85 : vector<16x1xf32> to vector<16x16xf32>
    %87 = arith.subf %83, %86 : vector<16x16xf32>
    %88 = math.exp %87 : vector<16x16xf32>
    %cst_25 = arith.constant dense<0.000000e+00> : vector<16xf32>
    %89 = vector.multi_reduction <add>, %88, %cst_25 [1] : vector<16x16xf32> to vector<16xf32>
    %90 = vector.shape_cast %89 : vector<16xf32> to vector<16x1xf32>
    %91 = tpu.reciprocal %90 {approx = true} : vector<16x1xf32> -> vector<16x1xf32>
    %92 = vector.broadcast %91 : vector<16x1xf32> to vector<16x16xf32>
    %93 = arith.mulf %88, %92 : vector<16x16xf32>
    %94 = vector.extract_strided_slice %33 {offsets = [0, 16], sizes = [16, 8], strides = [1, 1]} : vector<16x32xf32> to vector<16x8xf32>
    %95 = arith.truncf %93 : vector<16x16xf32> to vector<16x16xbf16>
    %96 = arith.truncf %94 : vector<16x8xf32> to vector<16x8xbf16>
    %cst_26 = arith.constant dense<0.000000e+00> : vector<16x8xf32>
    %97 = tpu.matmul %95, %96, %cst_26 {dimension_numbers = #tpu.dot_dimension_numbers<[1], [0], [0], [1], [0, 0, 1, 1], [], []>} : vector<16x16xbf16>, vector<16x8xbf16>, vector<16x8xf32> -> vector<16x8xf32>
    %98 = vector.extract_strided_slice %31 {offsets = [0, 24], sizes = [16, 8], strides = [1, 1]} : vector<16x32xf32> to vector<16x8xf32>
    %99 = vector.extract_strided_slice %32 {offsets = [0, 24], sizes = [16, 8], strides = [1, 1]} : vector<16x32xf32> to vector<16x8xf32>
    %100 = arith.truncf %98 : vector<16x8xf32> to vector<16x8xbf16>
    %101 = arith.truncf %99 : vector<16x8xf32> to vector<16x8xbf16>
    %cst_27 = arith.constant dense<0.000000e+00> : vector<16x16xf32>
    %102 = tpu.matmul %100, %101, %cst_27 {dimension_numbers = #tpu.dot_dimension_numbers<[1], [1], [0], [0], [0, 0, 1, 0], [], []>} : vector<16x8xbf16>, vector<16x8xbf16>, vector<16x16xf32> -> vector<16x16xf32>
    %103 = arith.addf %102, %11 : vector<16x16xf32>
    %cst_28 = arith.constant dense<0xFF800000> : vector<16xf32>
    %104 = vector.multi_reduction <maximumf>, %103, %cst_28 [1] : vector<16x16xf32> to vector<16xf32>
    %105 = vector.shape_cast %104 : vector<16xf32> to vector<16x1xf32>
    %106 = vector.broadcast %105 : vector<16x1xf32> to vector<16x16xf32>
    %107 = arith.subf %103, %106 : vector<16x16xf32>
    %108 = math.exp %107 : vector<16x16xf32>
    %cst_29 = arith.constant dense<0.000000e+00> : vector<16xf32>
    %109 = vector.multi_reduction <add>, %108, %cst_29 [1] : vector<16x16xf32> to vector<16xf32>
    %110 = vector.shape_cast %109 : vector<16xf32> to vector<16x1xf32>
    %111 = tpu.reciprocal %110 {approx = true} : vector<16x1xf32> -> vector<16x1xf32>
    %112 = vector.broadcast %111 : vector<16x1xf32> to vector<16x16xf32>
    %113 = arith.mulf %108, %112 : vector<16x16xf32>
    %114 = vector.extract_strided_slice %33 {offsets = [0, 24], sizes = [16, 8], strides = [1, 1]} : vector<16x32xf32> to vector<16x8xf32>
    %115 = arith.truncf %113 : vector<16x16xf32> to vector<16x16xbf16>
    %116 = arith.truncf %114 : vector<16x8xf32> to vector<16x8xbf16>
    %cst_30 = arith.constant dense<0.000000e+00> : vector<16x8xf32>
    %117 = tpu.matmul %115, %116, %cst_30 {dimension_numbers = #tpu.dot_dimension_numbers<[1], [0], [0], [1], [0, 0, 1, 1], [], []>} : vector<16x16xbf16>, vector<16x8xbf16>, vector<16x8xf32> -> vector<16x8xf32>
    %118 = tpu.concatenate %57, %77, %97, %117 in 1 : vector<16x8xf32>, vector<16x8xf32>, vector<16x8xf32>, vector<16x8xf32> -> vector<16x32xf32>
    %119 = arith.truncf %118 : vector<16x32xf32> to vector<16x32xbf16>
    %120 = arith.truncf %36 : vector<32x32xf32> to vector<32x32xbf16>
    %cst_31 = arith.constant dense<0.000000e+00> : vector<16x32xf32>
    %121 = tpu.matmul %119, %120, %cst_31 {dimension_numbers = #tpu.dot_dimension_numbers<[1], [0], [0], [1], [0, 0, 1, 1], [], []>} : vector<16x32xbf16>, vector<32x32xbf16>, vector<16x32xf32> -> vector<16x32xf32>
    %122 = vector.broadcast %37 : vector<1x32xf32> to vector<16x32xf32>
    %123 = arith.addf %121, %122 : vector<16x32xf32>
    %124 = arith.addf %1, %123 : vector<16x32xf32>
    %c65 = arith.constant 65 : index
    %c0_32 = arith.constant 0 : index
    %125 = vector.load %arg1[%c65, %c0_32] : memref<72x896xf32, #tpu.memory_space<vmem>>, vector<1x32xf32>
    %c66 = arith.constant 66 : index
    %c0_33 = arith.constant 0 : index
    %126 = vector.load %arg1[%c66, %c0_33] : memref<72x896xf32, #tpu.memory_space<vmem>>, vector<1x32xf32>
    %cst_34 = arith.constant dense<0.000000e+00> : vector<16xf32>
    %127 = vector.multi_reduction <add>, %124, %cst_34 [1] : vector<16x32xf32> to vector<16xf32>
    %128 = vector.shape_cast %127 : vector<16xf32> to vector<16x1xf32>
    %cst_35 = arith.constant 3.200000e+01 : f32
    %129 = vector.broadcast %cst_35 : f32 to vector<16x1xf32>
    %130 = arith.divf %128, %129 : vector<16x1xf32>
    %131 = vector.broadcast %130 : vector<16x1xf32> to vector<16x32xf32>
    %132 = arith.subf %124, %131 : vector<16x32xf32>
    %133 = arith.mulf %132, %132 : vector<16x32xf32>
    %cst_36 = arith.constant dense<0.000000e+00> : vector<16xf32>
    %134 = vector.multi_reduction <add>, %133, %cst_36 [1] : vector<16x32xf32> to vector<16xf32>
    %135 = vector.shape_cast %134 : vector<16xf32> to vector<16x1xf32>
    %cst_37 = arith.constant 3.200000e+01 : f32
    %136 = vector.broadcast %cst_37 : f32 to vector<16x1xf32>
    %137 = arith.divf %135, %136 : vector<16x1xf32>
    %138 = vector.broadcast %130 : vector<16x1xf32> to vector<16x32xf32>
    %139 = arith.subf %124, %138 : vector<16x32xf32>
    %cst_38 = arith.constant 9.99999974E-6 : f32
    %140 = vector.broadcast %cst_38 : f32 to vector<16x1xf32>
    %141 = arith.addf %137, %140 : vector<16x1xf32>
    %142 = math.rsqrt %141 : vector<16x1xf32>
    %143 = vector.broadcast %142 : vector<16x1xf32> to vector<16x32xf32>
    %144 = arith.mulf %139, %143 : vector<16x32xf32>
    %145 = vector.broadcast %125 : vector<1x32xf32> to vector<16x32xf32>
    %146 = arith.mulf %144, %145 : vector<16x32xf32>
    %147 = vector.broadcast %126 : vector<1x32xf32> to vector<16x32xf32>
    %148 = arith.addf %146, %147 : vector<16x32xf32>
    %c0_39 = arith.constant 0 : index
    %c384 = arith.constant 384 : index
    %149 = vector.load %arg1[%c0_39, %c384] : memref<72x896xf32, #tpu.memory_space<vmem>>, vector<32x32xf32>
    %150 = arith.truncf %148 : vector<16x32xf32> to vector<16x32xbf16>
    %151 = arith.truncf %149 : vector<32x32xf32> to vector<32x32xbf16>
    %cst_40 = arith.constant dense<0.000000e+00> : vector<16x32xf32>
    %152 = tpu.matmul %150, %151, %cst_40 {dimension_numbers = #tpu.dot_dimension_numbers<[1], [0], [0], [1], [0, 0, 1, 1], [], []>} : vector<16x32xbf16>, vector<32x32xbf16>, vector<16x32xf32> -> vector<16x32xf32>
    %c64_41 = arith.constant 64 : index
    %c384_42 = arith.constant 384 : index
    %153 = vector.load %arg1[%c64_41, %c384_42] : memref<72x896xf32, #tpu.memory_space<vmem>>, vector<1x32xf32>
    %154 = vector.broadcast %153 : vector<1x32xf32> to vector<16x32xf32>
    %155 = arith.addf %152, %154 : vector<16x32xf32>
    %cst_43 = arith.constant 0.353553385 : f32
    %156 = vector.broadcast %cst_43 : f32 to vector<16x32xf32>
    %157 = arith.mulf %155, %156 : vector<16x32xf32>
    %c0_44 = arith.constant 0 : index
    %c512 = arith.constant 512 : index
    %158 = vector.load %arg1[%c0_44, %c512] : memref<72x896xf32, #tpu.memory_space<vmem>>, vector<32x32xf32>
    %c64_45 = arith.constant 64 : index
    %c512_46 = arith.constant 512 : index
    %159 = vector.load %arg1[%c64_45, %c512_46] : memref<72x896xf32, #tpu.memory_space<vmem>>, vector<1x32xf32>
    %160 = vector.extract_strided_slice %157 {offsets = [0, 0], sizes = [16, 8], strides = [1, 1]} : vector<16x32xf32> to vector<16x8xf32>
    %161 = vector.extract_strided_slice %34 {offsets = [0, 0], sizes = [16, 8], strides = [1, 1]} : vector<16x32xf32> to vector<16x8xf32>
    %162 = arith.truncf %160 : vector<16x8xf32> to vector<16x8xbf16>
    %163 = arith.truncf %161 : vector<16x8xf32> to vector<16x8xbf16>
    %cst_47 = arith.constant dense<0.000000e+00> : vector<16x16xf32>
    %164 = tpu.matmul %162, %163, %cst_47 {dimension_numbers = #tpu.dot_dimension_numbers<[1], [1], [0], [0], [0, 0, 1, 0], [], []>} : vector<16x8xbf16>, vector<16x8xbf16>, vector<16x16xf32> -> vector<16x16xf32>
    %165 = arith.addf %164, %21 : vector<16x16xf32>
    %cst_48 = arith.constant dense<0xFF800000> : vector<16xf32>
    %166 = vector.multi_reduction <maximumf>, %165, %cst_48 [1] : vector<16x16xf32> to vector<16xf32>
    %167 = vector.shape_cast %166 : vector<16xf32> to vector<16x1xf32>
    %168 = vector.broadcast %167 : vector<16x1xf32> to vector<16x16xf32>
    %169 = arith.subf %165, %168 : vector<16x16xf32>
    %170 = math.exp %169 : vector<16x16xf32>
    %cst_49 = arith.constant dense<0.000000e+00> : vector<16xf32>
    %171 = vector.multi_reduction <add>, %170, %cst_49 [1] : vector<16x16xf32> to vector<16xf32>
    %172 = vector.shape_cast %171 : vector<16xf32> to vector<16x1xf32>
    %173 = tpu.reciprocal %172 {approx = true} : vector<16x1xf32> -> vector<16x1xf32>
    %174 = vector.broadcast %173 : vector<16x1xf32> to vector<16x16xf32>
    %175 = arith.mulf %170, %174 : vector<16x16xf32>
    %176 = vector.extract_strided_slice %35 {offsets = [0, 0], sizes = [16, 8], strides = [1, 1]} : vector<16x32xf32> to vector<16x8xf32>
    %177 = arith.truncf %175 : vector<16x16xf32> to vector<16x16xbf16>
    %178 = arith.truncf %176 : vector<16x8xf32> to vector<16x8xbf16>
    %cst_50 = arith.constant dense<0.000000e+00> : vector<16x8xf32>
    %179 = tpu.matmul %177, %178, %cst_50 {dimension_numbers = #tpu.dot_dimension_numbers<[1], [0], [0], [1], [0, 0, 1, 1], [], []>} : vector<16x16xbf16>, vector<16x8xbf16>, vector<16x8xf32> -> vector<16x8xf32>
    %180 = vector.extract_strided_slice %157 {offsets = [0, 8], sizes = [16, 8], strides = [1, 1]} : vector<16x32xf32> to vector<16x8xf32>
    %181 = vector.extract_strided_slice %34 {offsets = [0, 8], sizes = [16, 8], strides = [1, 1]} : vector<16x32xf32> to vector<16x8xf32>
    %182 = arith.truncf %180 : vector<16x8xf32> to vector<16x8xbf16>
    %183 = arith.truncf %181 : vector<16x8xf32> to vector<16x8xbf16>
    %cst_51 = arith.constant dense<0.000000e+00> : vector<16x16xf32>
    %184 = tpu.matmul %182, %183, %cst_51 {dimension_numbers = #tpu.dot_dimension_numbers<[1], [1], [0], [0], [0, 0, 1, 0], [], []>} : vector<16x8xbf16>, vector<16x8xbf16>, vector<16x16xf32> -> vector<16x16xf32>
    %185 = arith.addf %184, %21 : vector<16x16xf32>
    %cst_52 = arith.constant dense<0xFF800000> : vector<16xf32>
    %186 = vector.multi_reduction <maximumf>, %185, %cst_52 [1] : vector<16x16xf32> to vector<16xf32>
    %187 = vector.shape_cast %186 : vector<16xf32> to vector<16x1xf32>
    %188 = vector.broadcast %187 : vector<16x1xf32> to vector<16x16xf32>
    %189 = arith.subf %185, %188 : vector<16x16xf32>
    %190 = math.exp %189 : vector<16x16xf32>
    %cst_53 = arith.constant dense<0.000000e+00> : vector<16xf32>
    %191 = vector.multi_reduction <add>, %190, %cst_53 [1] : vector<16x16xf32> to vector<16xf32>
    %192 = vector.shape_cast %191 : vector<16xf32> to vector<16x1xf32>
    %193 = tpu.reciprocal %192 {approx = true} : vector<16x1xf32> -> vector<16x1xf32>
    %194 = vector.broadcast %193 : vector<16x1xf32> to vector<16x16xf32>
    %195 = arith.mulf %190, %194 : vector<16x16xf32>
    %196 = vector.extract_strided_slice %35 {offsets = [0, 8], sizes = [16, 8], strides = [1, 1]} : vector<16x32xf32> to vector<16x8xf32>
    %197 = arith.truncf %195 : vector<16x16xf32> to vector<16x16xbf16>
    %198 = arith.truncf %196 : vector<16x8xf32> to vector<16x8xbf16>
    %cst_54 = arith.constant dense<0.000000e+00> : vector<16x8xf32>
    %199 = tpu.matmul %197, %198, %cst_54 {dimension_numbers = #tpu.dot_dimension_numbers<[1], [0], [0], [1], [0, 0, 1, 1], [], []>} : vector<16x16xbf16>, vector<16x8xbf16>, vector<16x8xf32> -> vector<16x8xf32>
    %200 = vector.extract_strided_slice %157 {offsets = [0, 16], sizes = [16, 8], strides = [1, 1]} : vector<16x32xf32> to vector<16x8xf32>
    %201 = vector.extract_strided_slice %34 {offsets = [0, 16], sizes = [16, 8], strides = [1, 1]} : vector<16x32xf32> to vector<16x8xf32>
    %202 = arith.truncf %200 : vector<16x8xf32> to vector<16x8xbf16>
    %203 = arith.truncf %201 : vector<16x8xf32> to vector<16x8xbf16>
    %cst_55 = arith.constant dense<0.000000e+00> : vector<16x16xf32>
    %204 = tpu.matmul %202, %203, %cst_55 {dimension_numbers = #tpu.dot_dimension_numbers<[1], [1], [0], [0], [0, 0, 1, 0], [], []>} : vector<16x8xbf16>, vector<16x8xbf16>, vector<16x16xf32> -> vector<16x16xf32>
    %205 = arith.addf %204, %21 : vector<16x16xf32>
    %cst_56 = arith.constant dense<0xFF800000> : vector<16xf32>
    %206 = vector.multi_reduction <maximumf>, %205, %cst_56 [1] : vector<16x16xf32> to vector<16xf32>
    %207 = vector.shape_cast %206 : vector<16xf32> to vector<16x1xf32>
    %208 = vector.broadcast %207 : vector<16x1xf32> to vector<16x16xf32>
    %209 = arith.subf %205, %208 : vector<16x16xf32>
    %210 = math.exp %209 : vector<16x16xf32>
    %cst_57 = arith.constant dense<0.000000e+00> : vector<16xf32>
    %211 = vector.multi_reduction <add>, %210, %cst_57 [1] : vector<16x16xf32> to vector<16xf32>
    %212 = vector.shape_cast %211 : vector<16xf32> to vector<16x1xf32>
    %213 = tpu.reciprocal %212 {approx = true} : vector<16x1xf32> -> vector<16x1xf32>
    %214 = vector.broadcast %213 : vector<16x1xf32> to vector<16x16xf32>
    %215 = arith.mulf %210, %214 : vector<16x16xf32>
    %216 = vector.extract_strided_slice %35 {offsets = [0, 16], sizes = [16, 8], strides = [1, 1]} : vector<16x32xf32> to vector<16x8xf32>
    %217 = arith.truncf %215 : vector<16x16xf32> to vector<16x16xbf16>
    %218 = arith.truncf %216 : vector<16x8xf32> to vector<16x8xbf16>
    %cst_58 = arith.constant dense<0.000000e+00> : vector<16x8xf32>
    %219 = tpu.matmul %217, %218, %cst_58 {dimension_numbers = #tpu.dot_dimension_numbers<[1], [0], [0], [1], [0, 0, 1, 1], [], []>} : vector<16x16xbf16>, vector<16x8xbf16>, vector<16x8xf32> -> vector<16x8xf32>
    %220 = vector.extract_strided_slice %157 {offsets = [0, 24], sizes = [16, 8], strides = [1, 1]} : vector<16x32xf32> to vector<16x8xf32>
    %221 = vector.extract_strided_slice %34 {offsets = [0, 24], sizes = [16, 8], strides = [1, 1]} : vector<16x32xf32> to vector<16x8xf32>
    %222 = arith.truncf %220 : vector<16x8xf32> to vector<16x8xbf16>
    %223 = arith.truncf %221 : vector<16x8xf32> to vector<16x8xbf16>
    %cst_59 = arith.constant dense<0.000000e+00> : vector<16x16xf32>
    %224 = tpu.matmul %222, %223, %cst_59 {dimension_numbers = #tpu.dot_dimension_numbers<[1], [1], [0], [0], [0, 0, 1, 0], [], []>} : vector<16x8xbf16>, vector<16x8xbf16>, vector<16x16xf32> -> vector<16x16xf32>
    %225 = arith.addf %224, %21 : vector<16x16xf32>
    %cst_60 = arith.constant dense<0xFF800000> : vector<16xf32>
    %226 = vector.multi_reduction <maximumf>, %225, %cst_60 [1] : vector<16x16xf32> to vector<16xf32>
    %227 = vector.shape_cast %226 : vector<16xf32> to vector<16x1xf32>
    %228 = vector.broadcast %227 : vector<16x1xf32> to vector<16x16xf32>
    %229 = arith.subf %225, %228 : vector<16x16xf32>
    %230 = math.exp %229 : vector<16x16xf32>
    %cst_61 = arith.constant dense<0.000000e+00> : vector<16xf32>
    %231 = vector.multi_reduction <add>, %230, %cst_61 [1] : vector<16x16xf32> to vector<16xf32>
    %232 = vector.shape_cast %231 : vector<16xf32> to vector<16x1xf32>
    %233 = tpu.reciprocal %232 {approx = true} : vector<16x1xf32> -> vector<16x1xf32>
    %234 = vector.broadcast %233 : vector<16x1xf32> to vector<16x16xf32>
    %235 = arith.mulf %230, %234 : vector<16x16xf32>
    %236 = vector.extract_strided_slice %35 {offsets = [0, 24], sizes = [16, 8], strides = [1, 1]} : vector<16x32xf32> to vector<16x8xf32>
    %237 = arith.truncf %235 : vector<16x16xf32> to vector<16x16xbf16>
    %238 = arith.truncf %236 : vector<16x8xf32> to vector<16x8xbf16>
    %cst_62 = arith.constant dense<0.000000e+00> : vector<16x8xf32>
    %239 = tpu.matmul %237, %238, %cst_62 {dimension_numbers = #tpu.dot_dimension_numbers<[1], [0], [0], [1], [0, 0, 1, 1], [], []>} : vector<16x16xbf16>, vector<16x8xbf16>, vector<16x8xf32> -> vector<16x8xf32>
    %240 = tpu.concatenate %179, %199, %219, %239 in 1 : vector<16x8xf32>, vector<16x8xf32>, vector<16x8xf32>, vector<16x8xf32> -> vector<16x32xf32>
    %241 = arith.truncf %240 : vector<16x32xf32> to vector<16x32xbf16>
    %242 = arith.truncf %158 : vector<32x32xf32> to vector<32x32xbf16>
    %cst_63 = arith.constant dense<0.000000e+00> : vector<16x32xf32>
    %243 = tpu.matmul %241, %242, %cst_63 {dimension_numbers = #tpu.dot_dimension_numbers<[1], [0], [0], [1], [0, 0, 1, 1], [], []>} : vector<16x32xbf16>, vector<32x32xbf16>, vector<16x32xf32> -> vector<16x32xf32>
    %244 = vector.broadcast %159 : vector<1x32xf32> to vector<16x32xf32>
    %245 = arith.addf %243, %244 : vector<16x32xf32>
    %246 = arith.addf %148, %245 : vector<16x32xf32>
    %c67 = arith.constant 67 : index
    %c0_64 = arith.constant 0 : index
    %247 = vector.load %arg1[%c67, %c0_64] : memref<72x896xf32, #tpu.memory_space<vmem>>, vector<1x32xf32>
    %c68 = arith.constant 68 : index
    %c0_65 = arith.constant 0 : index
    %248 = vector.load %arg1[%c68, %c0_65] : memref<72x896xf32, #tpu.memory_space<vmem>>, vector<1x32xf32>
    %cst_66 = arith.constant dense<0.000000e+00> : vector<16xf32>
    %249 = vector.multi_reduction <add>, %246, %cst_66 [1] : vector<16x32xf32> to vector<16xf32>
    %250 = vector.shape_cast %249 : vector<16xf32> to vector<16x1xf32>
    %cst_67 = arith.constant 3.200000e+01 : f32
    %251 = vector.broadcast %cst_67 : f32 to vector<16x1xf32>
    %252 = arith.divf %250, %251 : vector<16x1xf32>
    %253 = vector.broadcast %252 : vector<16x1xf32> to vector<16x32xf32>
    %254 = arith.subf %246, %253 : vector<16x32xf32>
    %255 = arith.mulf %254, %254 : vector<16x32xf32>
    %cst_68 = arith.constant dense<0.000000e+00> : vector<16xf32>
    %256 = vector.multi_reduction <add>, %255, %cst_68 [1] : vector<16x32xf32> to vector<16xf32>
    %257 = vector.shape_cast %256 : vector<16xf32> to vector<16x1xf32>
    %cst_69 = arith.constant 3.200000e+01 : f32
    %258 = vector.broadcast %cst_69 : f32 to vector<16x1xf32>
    %259 = arith.divf %257, %258 : vector<16x1xf32>
    %260 = vector.broadcast %252 : vector<16x1xf32> to vector<16x32xf32>
    %261 = arith.subf %246, %260 : vector<16x32xf32>
    %cst_70 = arith.constant 9.99999974E-6 : f32
    %262 = vector.broadcast %cst_70 : f32 to vector<16x1xf32>
    %263 = arith.addf %259, %262 : vector<16x1xf32>
    %264 = math.rsqrt %263 : vector<16x1xf32>
    %265 = vector.broadcast %264 : vector<16x1xf32> to vector<16x32xf32>
    %266 = arith.mulf %261, %265 : vector<16x32xf32>
    %267 = vector.broadcast %247 : vector<1x32xf32> to vector<16x32xf32>
    %268 = arith.mulf %266, %267 : vector<16x32xf32>
    %269 = vector.broadcast %248 : vector<1x32xf32> to vector<16x32xf32>
    %270 = arith.addf %268, %269 : vector<16x32xf32>
    %c0_71 = arith.constant 0 : index
    %c640 = arith.constant 640 : index
    %271 = vector.load %arg1[%c0_71, %c640] : memref<72x896xf32, #tpu.memory_space<vmem>>, vector<32x64xf32>
    %272 = arith.truncf %270 : vector<16x32xf32> to vector<16x32xbf16>
    %273 = arith.truncf %271 : vector<32x64xf32> to vector<32x64xbf16>
    %cst_72 = arith.constant dense<0.000000e+00> : vector<16x64xf32>
    %274 = tpu.matmul %272, %273, %cst_72 {dimension_numbers = #tpu.dot_dimension_numbers<[1], [0], [0], [1], [0, 0, 1, 1], [], []>} : vector<16x32xbf16>, vector<32x64xbf16>, vector<16x64xf32> -> vector<16x64xf32>
    %c64_73 = arith.constant 64 : index
    %c640_74 = arith.constant 640 : index
    %275 = vector.load %arg1[%c64_73, %c640_74] : memref<72x896xf32, #tpu.memory_space<vmem>>, vector<1x64xf32>
    %276 = vector.broadcast %275 : vector<1x64xf32> to vector<16x64xf32>
    %277 = arith.addf %274, %276 : vector<16x64xf32>
    %cst_75 = arith.constant 0.000000e+00 : f32
    %278 = vector.broadcast %cst_75 : f32 to vector<16x64xf32>
    %279 = arith.maximumf %277, %278 : vector<16x64xf32>
    %c0_76 = arith.constant 0 : index
    %c768 = arith.constant 768 : index
    %280 = vector.load %arg1[%c0_76, %c768] : memref<72x896xf32, #tpu.memory_space<vmem>>, vector<64x32xf32>
    %281 = arith.truncf %279 : vector<16x64xf32> to vector<16x64xbf16>
    %282 = arith.truncf %280 : vector<64x32xf32> to vector<64x32xbf16>
    %cst_77 = arith.constant dense<0.000000e+00> : vector<16x32xf32>
    %283 = tpu.matmul %281, %282, %cst_77 {dimension_numbers = #tpu.dot_dimension_numbers<[1], [0], [0], [1], [0, 0, 1, 1], [], []>} : vector<16x64xbf16>, vector<64x32xbf16>, vector<16x32xf32> -> vector<16x32xf32>
    %c64_78 = arith.constant 64 : index
    %c768_79 = arith.constant 768 : index
    %284 = vector.load %arg1[%c64_78, %c768_79] : memref<72x896xf32, #tpu.memory_space<vmem>>, vector<1x32xf32>
    %285 = vector.broadcast %284 : vector<1x32xf32> to vector<16x32xf32>
    %286 = arith.addf %283, %285 : vector<16x32xf32>
    %287 = arith.addf %270, %286 : vector<16x32xf32>
    %c69 = arith.constant 69 : index
    %c0_80 = arith.constant 0 : index
    %288 = vector.load %arg1[%c69, %c0_80] : memref<72x896xf32, #tpu.memory_space<vmem>>, vector<1x32xf32>
    %c70 = arith.constant 70 : index
    %c0_81 = arith.constant 0 : index
    %289 = vector.load %arg1[%c70, %c0_81] : memref<72x896xf32, #tpu.memory_space<vmem>>, vector<1x32xf32>
    %cst_82 = arith.constant dense<0.000000e+00> : vector<16xf32>
    %290 = vector.multi_reduction <add>, %287, %cst_82 [1] : vector<16x32xf32> to vector<16xf32>
    %291 = vector.shape_cast %290 : vector<16xf32> to vector<16x1xf32>
    %cst_83 = arith.constant 3.200000e+01 : f32
    %292 = vector.broadcast %cst_83 : f32 to vector<16x1xf32>
    %293 = arith.divf %291, %292 : vector<16x1xf32>
    %294 = vector.broadcast %293 : vector<16x1xf32> to vector<16x32xf32>
    %295 = arith.subf %287, %294 : vector<16x32xf32>
    %296 = arith.mulf %295, %295 : vector<16x32xf32>
    %cst_84 = arith.constant dense<0.000000e+00> : vector<16xf32>
    %297 = vector.multi_reduction <add>, %296, %cst_84 [1] : vector<16x32xf32> to vector<16xf32>
    %298 = vector.shape_cast %297 : vector<16xf32> to vector<16x1xf32>
    %cst_85 = arith.constant 3.200000e+01 : f32
    %299 = vector.broadcast %cst_85 : f32 to vector<16x1xf32>
    %300 = arith.divf %298, %299 : vector<16x1xf32>
    %301 = vector.broadcast %293 : vector<16x1xf32> to vector<16x32xf32>
    %302 = arith.subf %287, %301 : vector<16x32xf32>
    %cst_86 = arith.constant 9.99999974E-6 : f32
    %303 = vector.broadcast %cst_86 : f32 to vector<16x1xf32>
    %304 = arith.addf %300, %303 : vector<16x1xf32>
    %305 = math.rsqrt %304 : vector<16x1xf32>
    %306 = vector.broadcast %305 : vector<16x1xf32> to vector<16x32xf32>
    %307 = arith.mulf %302, %306 : vector<16x32xf32>
    %308 = vector.broadcast %288 : vector<1x32xf32> to vector<16x32xf32>
    %309 = arith.mulf %307, %308 : vector<16x32xf32>
    %310 = vector.broadcast %289 : vector<1x32xf32> to vector<16x32xf32>
    %311 = arith.addf %309, %310 : vector<16x32xf32>
    %c0_87 = arith.constant 0 : index
    %c0_88 = arith.constant 0 : index
    %312 = vector.load %arg2[%c0_87, %c0_88] : memref<16x32xf32, #tpu.memory_space<vmem>>, vector<16x32xf32>
    tpu.vector_store %arg2[%c0_87, %c0_88], %311 {strides = array<i32>} : memref<16x32xf32, #tpu.memory_space<vmem>>, vector<16x32xf32>,
    return
  }
}

</mosaic_0001>

<llo_original>
// kernel: decoder_block.1
$region0: #{decoder_block.1}
  #allocation0 [shape = 'u32[]', space=smem, size = 0x4, offset = 0x4, fixed_abs, tag = 'smem constant byte address 0x4 - core index']
  #allocation1 [shape = 'u32[72,128]{1,0:T(1,128)}', space=vmem, size = 0x9000, scoped, tag = 'internal scratch']
  %s0 = inlined_call_operand.vmem [shape: f32[32,32], index: 0, kind: input, shape index: {}]
  %s1 = inlined_call_operand.hbm [shape: f32[72,896], index: 1, kind: input, shape index: {}]
  %s2 = inlined_call_operand.hbm [shape: f32[16,32], index: 2, kind: output, shape index: {}]
  %s3 = sld [smem:[#allocation0]]
  $region22: #{decoder_block.1} parent=0
    _
  %s5 = ssub.s32 1, %s3
  %s6 = scalar_select 0, %s5, %s3
  $region1: #{decoder_block.1} parent=0
    #allocation2 [shape = 'u8[258048]{0}', space=vmem, size = 0x3f000, scoped, tag = 'input window, operand 1, single buffered']
    #allocation3 [shape = 's32[1]{0}', space=sflag, size = 0x4, scoped, tag = 'scoped memory for decoder_block.1']
    #allocation4 [shape = 's32[1]{0}', space=sflag, size = 0x4, scoped, tag = 'scoped memory for decoder_block.1']
    #allocation5 [shape = 'u8[8192]{0}', space=vmem, size = 0x2000, scoped, tag = 'output window, operand 0, single buffered']
    %7 = vsyncpa [#allocation3], 0
    %8 = vsyncpa [#allocation4], 0
    // Predicated region
    $region2: #{decoder_block.1} parent=1 // pred_check
      _
    $region3: #{decoder_block.1} parent=1 // pred_check_branch
      %10 = sbr.rel (0) target = $region5
    $region4: #{decoder_block.1} parent=1 // pred_region
      _
    $region5: #{decoder_block.1} parent=1 // pred_fallthru
      _
    // Predicated region
    $region6: #{decoder_block.1} parent=1 // pred_check
      _
    $region7: #{decoder_block.1} parent=1 // pred_check_branch
      %12 = sbr.rel (0) target = $region9
    $region8: #{decoder_block.1} parent=1 // pred_region
      %14 = vsyncadd [#allocation3], 0
      %s15 = sshll.u32 %s1, 4
      %s16 = int_to_ptr.hbm [resolvable:$true] %s15
      %s17 = sshll.u32 [#allocation2], 4
      %s18 = int_to_ptr.vmem [resolvable:$true] %s17
      %23 = dma.hbm_to_vmem [thread:$0]  %s16, 8064, %s18, [#allocation3], 896, 896, 56
    $region9: #{decoder_block.1} parent=1 // pred_fallthru
      _
    // Predicated region
    $region10: #{decoder_block.1} parent=1 // pred_check
      _
    $region11: #{decoder_block.1} parent=1 // pred_check_branch
      %25 = sbr.rel (0) target = $region13
    $region12: #{decoder_block.1} parent=1 // pred_region
      %27 = dma.done [#allocation3], 8064
    $region13: #{decoder_block.1} parent=1 // pred_fallthru
      _
    %v29 = vld [vmem:[%s0] sm:$0xff]
    %v30 = vld [vmem:[%s0 + $0x8] sm:$0xff]
    %v31 = vld [vmem:[%s0 + $0x10] sm:$0xff]
    %v32 = vld [vmem:[%s0 + $0x18] sm:$0xff]
    %v33 = vlaneseq
    %v34 = vshrl.u32 %v33, 7
    %v35 = vadd.s32 %v34, 8
    %v36 = vshra.s32 %v34, 3
    %v37 = vshra.s32 %v35, 3
    %v38 = vlaneseq
    %v39 = vand.u32 %v38, 127
    %v40 = vshra.s32 %v39, 3
    %vm41 = vcmp.eq.s32.totalorder %v36, %v40
    %vm42 = vcmp.eq.s32.totalorder %v37, %v40
    %v43 = vsel %vm41, 0.0, -1e+30
    %v44 = vsel %vm42, 0.0, -1e+30
    %v45 = vld [vmem:[#allocation2] sm:$0xff]
    %v46 = vld [vmem:[#allocation2 + $0x8] sm:$0xff]
    %v47 = vld [vmem:[#allocation2 + $0x38] sm:$0xff]
    %v48 = vld [vmem:[#allocation2 + $0x40] sm:$0xff]
    %v49 = vld [vmem:[#allocation2 + $0x70] sm:$0xff]
    %v50 = vld [vmem:[#allocation2 + $0x78] sm:$0xff]
    %v51 = vld [vmem:[#allocation2 + $0xa8] sm:$0xff]
    %v52 = vld [vmem:[#allocation2 + $0xb0] sm:$0xff]
    %v53 = vpack.c.bf16 %v30, %v29
    %v54 = vpack.c.bf16 %v32, %v31
    %v55 = vpack.c.bf16 %v47, %v45
    %v56 = vpack.c.bf16 %v48, %v46
    %v57 = vpack.c.bf16 %v51, %v49
    %v58 = vpack.c.bf16 %v52, %v50
    %s59 = scalar_lea.vmem [#allocation2], 448
    %v60 = vld [vmem:[%s59] ss:$8 sm:$0x3]
    %v62 = vperm.slane %v60, 0
    %v63 = vperm.slane %v60, 1
    %vm66 = vcmask 261120
    %v68 = vsel %vm66, %v53, 0
    %v71 = vsel %vm66, %v54, 0
    %73 = vmatpush.bf16.msra.mxu0 0
    %74 = vmatpush.bf16.msra.mxu0 0
    %75 = vmatpush.bf16.msra.mxu0 0
    %76 = vmatpush.bf16.msra.mxu0 0
    %77 = vmatpush.bf16.msra.mxu0 0
    %78 = vmatpush.bf16.msra.mxu0 0
    %79 = vmatpush.bf16.msra.mxu0 %v57
    %80 = vmatpush.bf16.msra.mxu0 %v55
    %81 = vmatmul.bf16.gmra.mxu0 %v68
    %v82 = vpop.f32.mrf.mxu0
    %v83 = vadd.f32 %v62, %v82
    %v84 = vpop.f32.mrf.mxu0
    %v85 = vadd.f32 %v62, %v84
    %86 = vmatmul.bf16.gmra.mxu0 %v71
    %v87 = vpop.f32.mrf.mxu0
    %v88 = vadd.f32 %v62, %v87
    %v89 = vpop.f32.mrf.mxu0
    %v90 = vadd.f32 %v62, %v89
    %91 = vdwg.mxu0
    %92 = vmatpush.bf16.msra.mxu0 0
    %93 = vmatpush.bf16.msra.mxu0 0
    %94 = vmatpush.bf16.msra.mxu0 0
    %95 = vmatpush.bf16.msra.mxu0 0
    %96 = vmatpush.bf16.msra.mxu0 0
    %97 = vmatpush.bf16.msra.mxu0 0
    %98 = vmatpush.bf16.msra.mxu0 %v58
    %99 = vmatpush.bf16.msra.mxu0 %v56
    %100 = vmatmul.bf16.gmra.mxu0 %v68
    %v101 = vpop.f32.mrf.mxu0
    %v102 = vpop.f32.mrf.mxu0
    %103 = vmatmul.bf16.gmra.mxu0 %v71
    %v104 = vpop.f32.mrf.mxu0
    %v105 = vadd.f32 %v63, %v104
    %v106 = vpop.f32.mrf.mxu0
    %v107 = vadd.f32 %v63, %v106
    %108 = vdwg.mxu0
    %v109 = vmul.f32 %v83, 0.35355338
    %v110 = vmul.f32 %v85, 0.35355338
    %v111 = vld [vmem:[#allocation2 + $0x10] sm:$0xff]
    %v112 = vld [vmem:[#allocation2 + $0x48] sm:$0xff]
    %v113 = vld [vmem:[#allocation2 + $0x80] sm:$0xff]
    %v114 = vld [vmem:[#allocation2 + $0xb8] sm:$0xff]
    %v115 = vld [vmem:[#allocation2 + $0x1d0] ss:$0 sm:$0xff]
    %v116 = vpack.c.bf16 %v110, %v109
    %v117 = vpack.c.bf16 %v85, %v83
    %119 = vrot.lane.b32.xlu0 %v117, 96
    %v120 = vpop.permute.xlu0 %119
    %vm121 = vcmask 64512
    %v123 = vsel %vm121, %v116, 0
    %v126 = vsel %vm121, %v120, 0
    %128 = vmatpush.bf16.xpose.msra.mxu0 0
    %129 = vmatpush.bf16.xpose.msra.mxu0 0
    %130 = vmatpush.bf16.xpose.msra.mxu0 0
    %131 = vmatpush.bf16.xpose.msra.mxu0 0
    %132 = vmatpush.bf16.xpose.msra.mxu0 0
    %133 = vmatpush.bf16.xpose.msra.mxu0 0
    %134 = vmatpush.bf16.xpose.msra.mxu0 0
    %135 = vmatpush.bf16.xpose.msra.mxu0 %v126
    %136 = vmatmul.bf16.gmra.mxu0 %v123
    %v137 = vpop.f32.mrf.mxu0
    %v138 = vadd.f32 %v43, %v137
    %v139 = vpop.f32.mrf.mxu0
    %v140 = vadd.f32 %v44, %v139
    %141 = vdwg.mxu0
    %vm142 = vcmask 130048
    %v143 = vsel %vm142, %v138, -inf
    %144 = vmax.xlane.f32.xlu0 %v143
    %v145 = vpop.xlane.xlu0 %144
    %v146 = vsel %vm142, %v140, -inf
    %147 = vmax.xlane.f32.xlu0 %v146
    %v148 = vpop.xlane.xlu0 %147
    %v149 = vsub.f32 %v138, %v145
    %v150 = vsub.f32 %v140, %v148
    %v151 = vmul.f32 %v149, 1.442695
    %v152 = vpow.pop %v151
    %v153 = vmul.f32 %v150, 1.442695
    %v154 = vpow.pop %v153
    %v155 = vsel %vm142, %v152, 0.0
    %156 = vadd.xlane.f32.xlu0 %v155
    %v157 = vpop.xlane.xlu0 %156
    %v158 = vsel %vm142, %v154, 0.0
    %159 = vadd.xlane.f32.xlu0 %v158
    %v160 = vpop.xlane.xlu0 %159
    %v161 = vrcp.pop %v157
    %v162 = vrcp.pop %v160
    %v163 = vmul.f32 %v152, %v161
    %v164 = vmul.f32 %v154, %v162
    %v165 = vpack.c.bf16 %v164, %v163
    %166 = vrot.lane.b32.xlu0 %v117, 64
    %v167 = vpop.permute.xlu0 %166
    %v170 = vsel %vm142, %v165, 0
    %172 = vmatpush.bf16.msra.mxu0 0
    %173 = vmatpush.bf16.msra.mxu0 0
    %174 = vmatpush.bf16.msra.mxu0 0
    %175 = vmatpush.bf16.msra.mxu0 0
    %176 = vmatpush.bf16.msra.mxu0 0
    %177 = vmatpush.bf16.msra.mxu0 0
    %178 = vmatpush.bf16.msra.mxu0 0
    %179 = vmatpush.bf16.msra.mxu0 %v167
    %180 = vmatmul.bf16.gmra.mxu0 %v170
    %v181 = vpop.f32.mrf.mxu0
    %v182 = vadd.f32 0.0, %v181
    %v183 = vpop.f32.mrf.mxu0
    %v184 = vadd.f32 0.0, %v183
    %185 = vdwg.mxu0
    %187 = vrot.lane.b32.xlu0 %v116, 120
    %v188 = vpop.permute.xlu0 %187
    %189 = vrot.lane.b32.xlu0 %v117, 88
    %v190 = vpop.permute.xlu0 %189
    %v192 = vsel %vm121, %v188, 0
    %v195 = vsel %vm121, %v190, 0
    %197 = vmatpush.bf16.xpose.msra.mxu0 0
    %198 = vmatpush.bf16.xpose.msra.mxu0 0
    %199 = vmatpush.bf16.xpose.msra.mxu0 0
    %200 = vmatpush.bf16.xpose.msra.mxu0 0
    %201 = vmatpush.bf16.xpose.msra.mxu0 0
    %202 = vmatpush.bf16.xpose.msra.mxu0 0
    %203 = vmatpush.bf16.xpose.msra.mxu0 0
    %204 = vmatpush.bf16.xpose.msra.mxu0 %v195
    %205 = vmatmul.bf16.gmra.mxu0 %v192
    %v206 = vpop.f32.mrf.mxu0
    %v207 = vadd.f32 %v43, %v206
    %v208 = vpop.f32.mrf.mxu0
    %v209 = vadd.f32 %v44, %v208
    %210 = vdwg.mxu0
    %v211 = vsel %vm142, %v207, -inf
    %212 = vmax.xlane.f32.xlu0 %v211
    %v213 = vpop.xlane.xlu0 %212
    %v214 = vsel %vm142, %v209, -inf
    %215 = vmax.xlane.f32.xlu0 %v214
    %v216 = vpop.xlane.xlu0 %215
    %v217 = vsub.f32 %v207, %v213
    %v218 = vsub.f32 %v209, %v216
    %v219 = vmul.f32 %v217, 1.442695
    %v220 = vpow.pop %v219
    %v221 = vmul.f32 %v218, 1.442695
    %v222 = vpow.pop %v221
    %v223 = vsel %vm142, %v220, 0.0
    %224 = vadd.xlane.f32.xlu0 %v223
    %v225 = vpop.xlane.xlu0 %224
    %v226 = vsel %vm142, %v222, 0.0
    %227 = vadd.xlane.f32.xlu0 %v226
    %v228 = vpop.xlane.xlu0 %227
    %v229 = vrcp.pop %v225
    %v230 = vrcp.pop %v228
    %v231 = vmul.f32 %v220, %v229
    %v232 = vmul.f32 %v222, %v230
    %v233 = vpack.c.bf16 %v232, %v231
    %234 = vrot.lane.b32.xlu0 %v117, 56
    %v235 = vpop.permute.xlu0 %234
    %v238 = vsel %vm142, %v233, 0
    %240 = vmatpush.bf16.msra.mxu0 0
    %241 = vmatpush.bf16.msra.mxu0 0
    %242 = vmatpush.bf16.msra.mxu0 0
    %243 = vmatpush.bf16.msra.mxu0 0
    %244 = vmatpush.bf16.msra.mxu0 0
    %245 = vmatpush.bf16.msra.mxu0 0
    %246 = vmatpush.bf16.msra.mxu0 0
    %247 = vmatpush.bf16.msra.mxu0 %v235
    %248 = vmatmul.bf16.gmra.mxu0 %v238
    %v249 = vpop.f32.mrf.mxu0
    %v250 = vadd.f32 0.0, %v249
    %v251 = vpop.f32.mrf.mxu0
    %v252 = vadd.f32 0.0, %v251
    %253 = vdwg.mxu0
    %254 = vrot.lane.b32.xlu0 %v116, 112
    %v255 = vpop.permute.xlu0 %254
    %256 = vrot.lane.b32.xlu0 %v117, 80
    %v257 = vpop.permute.xlu0 %256
    %v259 = vsel %vm121, %v255, 0
    %v262 = vsel %vm121, %v257, 0
    %264 = vmatpush.bf16.xpose.msra.mxu0 0
    %265 = vmatpush.bf16.xpose.msra.mxu0 0
    %266 = vmatpush.bf16.xpose.msra.mxu0 0
    %267 = vmatpush.bf16.xpose.msra.mxu0 0
    %268 = vmatpush.bf16.xpose.msra.mxu0 0
    %269 = vmatpush.bf16.xpose.msra.mxu0 0
    %270 = vmatpush.bf16.xpose.msra.mxu0 0
    %271 = vmatpush.bf16.xpose.msra.mxu0 %v262
    %272 = vmatmul.bf16.gmra.mxu0 %v259
    %v273 = vpop.f32.mrf.mxu0
    %v274 = vadd.f32 %v43, %v273
    %v275 = vpop.f32.mrf.mxu0
    %v276 = vadd.f32 %v44, %v275
    %277 = vdwg.mxu0
    %v278 = vsel %vm142, %v274, -inf
    %279 = vmax.xlane.f32.xlu0 %v278
    %v280 = vpop.xlane.xlu0 %279
    %v281 = vsel %vm142, %v276, -inf
    %282 = vmax.xlane.f32.xlu0 %v281
    %v283 = vpop.xlane.xlu0 %282
    %v284 = vsub.f32 %v274, %v280
    %v285 = vsub.f32 %v276, %v283
    %v286 = vmul.f32 %v284, 1.442695
    %v287 = vpow.pop %v286
    %v288 = vmul.f32 %v285, 1.442695
    %v289 = vpow.pop %v288
    %v290 = vsel %vm142, %v287, 0.0
    %291 = vadd.xlane.f32.xlu0 %v290
    %v292 = vpop.xlane.xlu0 %291
    %v293 = vsel %vm142, %v289, 0.0
    %294 = vadd.xlane.f32.xlu0 %v293
    %v295 = vpop.xlane.xlu0 %294
    %v296 = vrcp.pop %v292
    %v297 = vrcp.pop %v295
    %v298 = vmul.f32 %v287, %v296
    %v299 = vmul.f32 %v289, %v297
    %v300 = vpack.c.bf16 %v299, %v298
    %301 = vrot.lane.b32.xlu0 %v117, 48
    %v302 = vpop.permute.xlu0 %301
    %v305 = vsel %vm142, %v300, 0
    %307 = vmatpush.bf16.msra.mxu0 0
    %308 = vmatpush.bf16.msra.mxu0 0
    %309 = vmatpush.bf16.msra.mxu0 0
    %310 = vmatpush.bf16.msra.mxu0 0
    %311 = vmatpush.bf16.msra.mxu0 0
    %312 = vmatpush.bf16.msra.mxu0 0
    %313 = vmatpush.bf16.msra.mxu0 0
    %314 = vmatpush.bf16.msra.mxu0 %v302
    %315 = vmatmul.bf16.gmra.mxu0 %v305
    %v316 = vpop.f32.mrf.mxu0
    %v317 = vadd.f32 0.0, %v316
    %v318 = vpop.f32.mrf.mxu0
    %v319 = vadd.f32 0.0, %v318
    %320 = vdwg.mxu0
    %321 = vrot.lane.b32.xlu0 %v116, 104
    %v322 = vpop.permute.xlu0 %321
    %323 = vrot.lane.b32.xlu0 %v117, 72
    %v324 = vpop.permute.xlu0 %323
    %v326 = vsel %vm121, %v322, 0
    %v329 = vsel %vm121, %v324, 0
    %331 = vmatpush.bf16.xpose.msra.mxu0 0
    %332 = vmatpush.bf16.xpose.msra.mxu0 0
    %333 = vmatpush.bf16.xpose.msra.mxu0 0
    %334 = vmatpush.bf16.xpose.msra.mxu0 0
    %335 = vmatpush.bf16.xpose.msra.mxu0 0
    %336 = vmatpush.bf16.xpose.msra.mxu0 0
    %337 = vmatpush.bf16.xpose.msra.mxu0 0
    %338 = vmatpush.bf16.xpose.msra.mxu0 %v329
    %339 = vmatmul.bf16.gmra.mxu0 %v326
    %v340 = vpop.f32.mrf.mxu0
    %v341 = vadd.f32 %v43, %v340
    %v342 = vpop.f32.mrf.mxu0
    %v343 = vadd.f32 %v44, %v342
    %344 = vdwg.mxu0
    %v345 = vsel %vm142, %v341, -inf
    %346 = vmax.xlane.f32.xlu0 %v345
    %v347 = vpop.xlane.xlu0 %346
    %v348 = vsel %vm142, %v343, -inf
    %349 = vmax.xlane.f32.xlu0 %v348
    %v350 = vpop.xlane.xlu0 %349
    %v351 = vsub.f32 %v341, %v347
    %v352 = vsub.f32 %v343, %v350
    %v353 = vmul.f32 %v351, 1.442695
    %v354 = vpow.pop %v353
    %v355 = vmul.f32 %v352, 1.442695
    %v356 = vpow.pop %v355
    %v357 = vsel %vm142, %v354, 0.0
    %358 = vadd.xlane.f32.xlu0 %v357
    %v359 = vpop.xlane.xlu0 %358
    %v360 = vsel %vm142, %v356, 0.0
    %361 = vadd.xlane.f32.xlu0 %v360
    %v362 = vpop.xlane.xlu0 %361
    %v363 = vrcp.pop %v359
    %v364 = vrcp.pop %v362
    %v365 = vmul.f32 %v354, %v363
    %v366 = vmul.f32 %v356, %v364
    %v367 = vpack.c.bf16 %v366, %v365
    %368 = vrot.lane.b32.xlu0 %v117, 40
    %v369 = vpop.permute.xlu0 %368
    %v372 = vsel %vm142, %v367, 0
    %374 = vmatpush.bf16.msra.mxu0 0
    %375 = vmatpush.bf16.msra.mxu0 0
    %376 = vmatpush.bf16.msra.mxu0 0
    %377 = vmatpush.bf16.msra.mxu0 0
    %378 = vmatpush.bf16.msra.mxu0 0
    %379 = vmatpush.bf16.msra.mxu0 0
    %380 = vmatpush.bf16.msra.mxu0 0
    %381 = vmatpush.bf16.msra.mxu0 %v369
    %382 = vmatmul.bf16.gmra.mxu0 %v372
    %v383 = vpop.f32.mrf.mxu0
    %v384 = vadd.f32 0.0, %v383
    %v385 = vpop.f32.mrf.mxu0
    %v386 = vadd.f32 0.0, %v385
    %387 = vdwg.mxu0
    %390 = vrot.lane.b32.xlu0 %v250, 8
    %v391 = vpop.permute.xlu0 %390
    %392 = vrot.lane.b32.xlu0 %v252, 8
    %v393 = vpop.permute.xlu0 %392
    %398 = vrot.lane.b32.xlu0 %v317, 16
    %v399 = vpop.permute.xlu0 %398
    %400 = vrot.lane.b32.xlu0 %v319, 16
    %v401 = vpop.permute.xlu0 %400
    %406 = vrot.lane.b32.xlu0 %v384, 24
    %v407 = vpop.permute.xlu0 %406
    %408 = vrot.lane.b32.xlu0 %v386, 24
    %v409 = vpop.permute.xlu0 %408
    %v412 = vsel %vm121, %v182, %v391
    %v413 = vsel %vm121, %v184, %v393
    %v414 = vsel %vm142, %v412, %v399
    %v415 = vsel %vm142, %v413, %v401
    %vm416 = vcmask 195584
    %v417 = vsel %vm416, %v414, %v407
    %v418 = vsel %vm416, %v415, %v409
    %v419 = vpack.c.bf16 %v418, %v417
    %v420 = vpack.c.bf16 %v112, %v111
    %v421 = vpack.c.bf16 %v114, %v113
    %v423 = vsel %vm66, %v419, 0
    %425 = vmatpush.bf16.msra.mxu0 0
    %426 = vmatpush.bf16.msra.mxu0 0
    %427 = vmatpush.bf16.msra.mxu0 0
    %428 = vmatpush.bf16.msra.mxu0 0
    %429 = vmatpush.bf16.msra.mxu0 0
    %430 = vmatpush.bf16.msra.mxu0 0
    %431 = vmatpush.bf16.msra.mxu0 %v421
    %432 = vmatpush.bf16.msra.mxu0 %v420
    %433 = vmatmul.bf16.gmra.mxu0 %v423
    %v434 = vpop.f32.mrf.mxu0
    %v435 = vadd.f32 %v115, %v434
    %v436 = vpop.f32.mrf.mxu0
    %v437 = vadd.f32 %v115, %v436
    %438 = vdwg.mxu0
    %v439 = vadd.f32 %v29, %v435
    %v440 = vadd.f32 %v30, %v437
    %v441 = vld [vmem:[#allocation2 + $0x1c1] ss:$0 sm:$0xff]
    %v442 = vld [vmem:[#allocation2 + $0x1c2] ss:$0 sm:$0xff]
    %v443 = vsel %vm66, %v439, 0.0
    %444 = vadd.xlane.f32.xlu0 %v443
    %v445 = vpop.xlane.xlu0 %444
    %v446 = vsel %vm66, %v440, 0.0
    %447 = vadd.xlane.f32.xlu0 %v446
    %v448 = vpop.xlane.xlu0 %447
    %v449 = vrcp.pop 32.0
    %v450 = vmul.f32 32.0, %v449
    %v451 = vsub.f32 1.0, %v450
    %v452 = vmul.f32 %v449, %v451
    %v453 = vadd.f32 %v449, %v452
    %vm454 = vweird.f32 %v449
    %v455 = vsel %vm454, %v449, %v453
    %v456 = vmul.f32 %v445, %v455
    %v457 = vmul.f32 %v448, %v455
    %v458 = vsub.f32 %v439, %v456
    %v459 = vsub.f32 %v440, %v457
    %v460 = vmul.f32 %v458, %v458
    %v461 = vmul.f32 %v459, %v459
    %v462 = vsel %vm66, %v460, 0.0
    %463 = vadd.xlane.f32.xlu0 %v462
    %v464 = vpop.xlane.xlu0 %463
    %v465 = vsel %vm66, %v461, 0.0
    %466 = vadd.xlane.f32.xlu0 %v465
    %v467 = vpop.xlane.xlu0 %466
    %v468 = vmul.f32 %v464, %v455
    %v469 = vmul.f32 %v467, %v455
    %v470 = vadd.f32 %v468, 1e-05
    %v471 = vadd.f32 %v469, 1e-05
    %v472 = vrsqrt.pop %v470
    %v473 = vmul.f32 %v472, %v470
    %v474 = vmul.f32 %v473, %v472
    %v475 = vmul.f32 0.5, %v474
    %v476 = vsub.f32 1.5, %v475
    %v477 = vmul.f32 %v472, %v476
    %vm478 = vweird.f32 %v470
    %vm479 = vweird.f32 %v472
    %vm480 = vmor %vm478, %vm479
    %v481 = vsel %vm480, %v472, %v477
    %v482 = vrsqrt.pop %v471
    %v483 = vmul.f32 %v482, %v471
    %v484 = vmul.f32 %v483, %v482
    %v485 = vmul.f32 0.5, %v484
    %v486 = vsub.f32 1.5, %v485
    %v487 = vmul.f32 %v482, %v486
    %vm488 = vweird.f32 %v471
    %vm489 = vweird.f32 %v482
    %vm490 = vmor %vm488, %vm489
    %v491 = vsel %vm490, %v482, %v487
    %v492 = vmul.f32 %v458, %v481
    %v493 = vmul.f32 %v459, %v491
    %v494 = vmul.f32 %v492, %v441
    %v495 = vmul.f32 %v493, %v441
    %v496 = vadd.f32 %v494, %v442
    %v497 = vadd.f32 %v495, %v442
    %v498 = vld [vmem:[#allocation2 + $0x18] sm:$0xff]
    %v499 = vld [vmem:[#allocation2 + $0x50] sm:$0xff]
    %v500 = vld [vmem:[#allocation2 + $0x88] sm:$0xff]
    %v501 = vld [vmem:[#allocation2 + $0xc0] sm:$0xff]
    %v502 = vpack.c.bf16 %v497, %v496
    %v503 = vpack.c.bf16 %v499, %v498
    %v504 = vpack.c.bf16 %v501, %v500
    %v505 = vld [vmem:[#allocation2 + $0x1d8] ss:$0 sm:$0xff]
    %v507 = vsel %vm66, %v502, 0
    %509 = vmatpush.bf16.msra.mxu0 0
    %510 = vmatpush.bf16.msra.mxu0 0
    %511 = vmatpush.bf16.msra.mxu0 0
    %512 = vmatpush.bf16.msra.mxu0 0
    %513 = vmatpush.bf16.msra.mxu0 0
    %514 = vmatpush.bf16.msra.mxu0 0
    %515 = vmatpush.bf16.msra.mxu0 %v504
    %516 = vmatpush.bf16.msra.mxu0 %v503
    %517 = vmatmul.bf16.gmra.mxu0 %v507
    %v518 = vpop.f32.mrf.mxu0
    %v519 = vadd.f32 %v505, %v518
    %v520 = vpop.f32.mrf.mxu0
    %v521 = vadd.f32 %v505, %v520
    %522 = vdwg.mxu0
    %v523 = vmul.f32 %v519, 0.35355338
    %v524 = vmul.f32 %v521, 0.35355338
    %v525 = vld [vmem:[#allocation2 + $0x20] sm:$0xff]
    %v526 = vld [vmem:[#allocation2 + $0x58] sm:$0xff]
    %v527 = vld [vmem:[#allocation2 + $0x90] sm:$0xff]
    %v528 = vld [vmem:[#allocation2 + $0xc8] sm:$0xff]
    %v529 = vld [vmem:[#allocation2 + $0x1e0] ss:$0 sm:$0xff]
    %v530 = vpack.c.bf16 %v524, %v523
    %v531 = vpack.c.bf16 %v90, %v88
    %533 = vrot.lane.b32.xlu0 %v531, 32
    %v534 = vpop.permute.xlu0 %533
    %v536 = vsel %vm121, %v530, 0
    %v539 = vsel %vm121, %v534, 0
    %541 = vmatpush.bf16.xpose.msra.mxu0 0
    %542 = vmatpush.bf16.xpose.msra.mxu0 0
    %543 = vmatpush.bf16.xpose.msra.mxu0 0
    %544 = vmatpush.bf16.xpose.msra.mxu0 0
    %545 = vmatpush.bf16.xpose.msra.mxu0 0
    %546 = vmatpush.bf16.xpose.msra.mxu0 0
    %547 = vmatpush.bf16.xpose.msra.mxu0 0
    %548 = vmatpush.bf16.xpose.msra.mxu0 %v539
    %549 = vmatmul.bf16.gmra.mxu0 %v536
    %v550 = vpop.f32.mrf.mxu0
    %v551 = vadd.f32 %v43, %v550
    %v552 = vpop.f32.mrf.mxu0
    %v553 = vadd.f32 %v44, %v552
    %554 = vdwg.mxu0
    %v555 = vsel %vm142, %v551, -inf
    %556 = vmax.xlane.f32.xlu0 %v555
    %v557 = vpop.xlane.xlu0 %556
    %v558 = vsel %vm142, %v553, -inf
    %559 = vmax.xlane.f32.xlu0 %v558
    %v560 = vpop.xlane.xlu0 %559
    %v561 = vsub.f32 %v551, %v557
    %v562 = vsub.f32 %v553, %v560
    %v563 = vmul.f32 %v561, 1.442695
    %v564 = vpow.pop %v563
    %v565 = vmul.f32 %v562, 1.442695
    %v566 = vpow.pop %v565
    %v567 = vsel %vm142, %v564, 0.0
    %568 = vadd.xlane.f32.xlu0 %v567
    %v569 = vpop.xlane.xlu0 %568
    %v570 = vsel %vm142, %v566, 0.0
    %571 = vadd.xlane.f32.xlu0 %v570
    %v572 = vpop.xlane.xlu0 %571
    %v573 = vrcp.pop %v569
    %v574 = vrcp.pop %v572
    %v575 = vmul.f32 %v564, %v573
    %v576 = vmul.f32 %v566, %v574
    %v577 = vpack.c.bf16 %v576, %v575
    %v578 = vpack.c.bf16 %v107, %v105
    %v580 = vsel %vm142, %v577, 0
    %582 = vmatpush.bf16.msra.mxu0 0
    %583 = vmatpush.bf16.msra.mxu0 0
    %584 = vmatpush.bf16.msra.mxu0 0
    %585 = vmatpush.bf16.msra.mxu0 0
    %586 = vmatpush.bf16.msra.mxu0 0
    %587 = vmatpush.bf16.msra.mxu0 0
    %588 = vmatpush.bf16.msra.mxu0 0
    %589 = vmatpush.bf16.msra.mxu0 %v578
    %590 = vmatmul.bf16.gmra.mxu0 %v580
    %v591 = vpop.f32.mrf.mxu0
    %v592 = vadd.f32 0.0, %v591
    %v593 = vpop.f32.mrf.mxu0
    %v594 = vadd.f32 0.0, %v593
    %595 = vdwg.mxu0
    %597 = vrot.lane.b32.xlu0 %v530, 120
    %v598 = vpop.permute.xlu0 %597
    %599 = vrot.lane.b32.xlu0 %v531, 24
    %v600 = vpop.permute.xlu0 %599
    %v602 = vsel %vm121, %v598, 0
    %v605 = vsel %vm121, %v600, 0
    %607 = vmatpush.bf16.xpose.msra.mxu0 0
    %608 = vmatpush.bf16.xpose.msra.mxu0 0
    %609 = vmatpush.bf16.xpose.msra.mxu0 0
    %610 = vmatpush.bf16.xpose.msra.mxu0 0
    %611 = vmatpush.bf16.xpose.msra.mxu0 0
    %612 = vmatpush.bf16.xpose.msra.mxu0 0
    %613 = vmatpush.bf16.xpose.msra.mxu0 0
    %614 = vmatpush.bf16.xpose.msra.mxu0 %v605
    %615 = vmatmul.bf16.gmra.mxu0 %v602
    %v616 = vpop.f32.mrf.mxu0
    %v617 = vadd.f32 %v43, %v616
    %v618 = vpop.f32.mrf.mxu0
    %v619 = vadd.f32 %v44, %v618
    %620 = vdwg.mxu0
    %v621 = vsel %vm142, %v617, -inf
    %622 = vmax.xlane.f32.xlu0 %v621
    %v623 = vpop.xlane.xlu0 %622
    %v624 = vsel %vm142, %v619, -inf
    %625 = vmax.xlane.f32.xlu0 %v624
    %v626 = vpop.xlane.xlu0 %625
    %v627 = vsub.f32 %v617, %v623
    %v628 = vsub.f32 %v619, %v626
    %v629 = vmul.f32 %v627, 1.442695
    %v630 = vpow.pop %v629
    %v631 = vmul.f32 %v628, 1.442695
    %v632 = vpow.pop %v631
    %v633 = vsel %vm142, %v630, 0.0
    %634 = vadd.xlane.f32.xlu0 %v633
    %v635 = vpop.xlane.xlu0 %634
    %v636 = vsel %vm142, %v632, 0.0
    %637 = vadd.xlane.f32.xlu0 %v636
    %v638 = vpop.xlane.xlu0 %637
    %v639 = vrcp.pop %v635
    %v640 = vrcp.pop %v638
    %v641 = vmul.f32 %v630, %v639
    %v642 = vmul.f32 %v632, %v640
    %v643 = vpack.c.bf16 %v642, %v641
    %645 = vrot.lane.b32.xlu0 %v578, 120
    %v646 = vpop.permute.xlu0 %645
    %v649 = vsel %vm142, %v643, 0
    %651 = vmatpush.bf16.msra.mxu0 0
    %652 = vmatpush.bf16.msra.mxu0 0
    %653 = vmatpush.bf16.msra.mxu0 0
    %654 = vmatpush.bf16.msra.mxu0 0
    %655 = vmatpush.bf16.msra.mxu0 0
    %656 = vmatpush.bf16.msra.mxu0 0
    %657 = vmatpush.bf16.msra.mxu0 0
    %658 = vmatpush.bf16.msra.mxu0 %v646
    %659 = vmatmul.bf16.gmra.mxu0 %v649
    %v660 = vpop.f32.mrf.mxu0
    %v661 = vadd.f32 0.0, %v660
    %v662 = vpop.f32.mrf.mxu0
    %v663 = vadd.f32 0.0, %v662
    %664 = vdwg.mxu0
    %665 = vrot.lane.b32.xlu0 %v530, 112
    %v666 = vpop.permute.xlu0 %665
    %667 = vrot.lane.b32.xlu0 %v531, 16
    %v668 = vpop.permute.xlu0 %667
    %v670 = vsel %vm121, %v666, 0
    %v673 = vsel %vm121, %v668, 0
    %675 = vmatpush.bf16.xpose.msra.mxu0 0
    %676 = vmatpush.bf16.xpose.msra.mxu0 0
    %677 = vmatpush.bf16.xpose.msra.mxu0 0
    %678 = vmatpush.bf16.xpose.msra.mxu0 0
    %679 = vmatpush.bf16.xpose.msra.mxu0 0
    %680 = vmatpush.bf16.xpose.msra.mxu0 0
    %681 = vmatpush.bf16.xpose.msra.mxu0 0
    %682 = vmatpush.bf16.xpose.msra.mxu0 %v673
    %683 = vmatmul.bf16.gmra.mxu0 %v670
    %v684 = vpop.f32.mrf.mxu0
    %v685 = vadd.f32 %v43, %v684
    %v686 = vpop.f32.mrf.mxu0
    %v687 = vadd.f32 %v44, %v686
    %688 = vdwg.mxu0
    %v689 = vsel %vm142, %v685, -inf
    %690 = vmax.xlane.f32.xlu0 %v689
    %v691 = vpop.xlane.xlu0 %690
    %v692 = vsel %vm142, %v687, -inf
    %693 = vmax.xlane.f32.xlu0 %v692
    %v694 = vpop.xlane.xlu0 %693
    %v695 = vsub.f32 %v685, %v691
    %v696 = vsub.f32 %v687, %v694
    %v697 = vmul.f32 %v695, 1.442695
    %v698 = vpow.pop %v697
    %v699 = vmul.f32 %v696, 1.442695
    %v700 = vpow.pop %v699
    %v701 = vsel %vm142, %v698, 0.0
    %702 = vadd.xlane.f32.xlu0 %v701
    %v703 = vpop.xlane.xlu0 %702
    %v704 = vsel %vm142, %v700, 0.0
    %705 = vadd.xlane.f32.xlu0 %v704
    %v706 = vpop.xlane.xlu0 %705
    %v707 = vrcp.pop %v703
    %v708 = vrcp.pop %v706
    %v709 = vmul.f32 %v698, %v707
    %v710 = vmul.f32 %v700, %v708
    %v711 = vpack.c.bf16 %v710, %v709
    %712 = vrot.lane.b32.xlu0 %v578, 112
    %v713 = vpop.permute.xlu0 %712
    %v716 = vsel %vm142, %v711, 0
    %718 = vmatpush.bf16.msra.mxu0 0
    %719 = vmatpush.bf16.msra.mxu0 0
    %720 = vmatpush.bf16.msra.mxu0 0
    %721 = vmatpush.bf16.msra.mxu0 0
    %722 = vmatpush.bf16.msra.mxu0 0
    %723 = vmatpush.bf16.msra.mxu0 0
    %724 = vmatpush.bf16.msra.mxu0 0
    %725 = vmatpush.bf16.msra.mxu0 %v713
    %726 = vmatmul.bf16.gmra.mxu0 %v716
    %v727 = vpop.f32.mrf.mxu0
    %v728 = vadd.f32 0.0, %v727
    %v729 = vpop.f32.mrf.mxu0
    %v730 = vadd.f32 0.0, %v729
    %731 = vdwg.mxu0
    %732 = vrot.lane.b32.xlu0 %v530, 104
    %v733 = vpop.permute.xlu0 %732
    %734 = vrot.lane.b32.xlu0 %v531, 8
    %v735 = vpop.permute.xlu0 %734
    %v737 = vsel %vm121, %v733, 0
    %v740 = vsel %vm121, %v735, 0
    %742 = vmatpush.bf16.xpose.msra.mxu0 0
    %743 = vmatpush.bf16.xpose.msra.mxu0 0
    %744 = vmatpush.bf16.xpose.msra.mxu0 0
    %745 = vmatpush.bf16.xpose.msra.mxu0 0
    %746 = vmatpush.bf16.xpose.msra.mxu0 0
    %747 = vmatpush.bf16.xpose.msra.mxu0 0
    %748 = vmatpush.bf16.xpose.msra.mxu0 0
    %749 = vmatpush.bf16.xpose.msra.mxu0 %v740
    %750 = vmatmul.bf16.gmra.mxu0 %v737
    %v751 = vpop.f32.mrf.mxu0
    %v752 = vadd.f32 %v43, %v751
    %v753 = vpop.f32.mrf.mxu0
    %v754 = vadd.f32 %v44, %v753
    %755 = vdwg.mxu0
    %v756 = vsel %vm142, %v752, -inf
    %757 = vmax.xlane.f32.xlu0 %v756
    %v758 = vpop.xlane.xlu0 %757
    %v759 = vsel %vm142, %v754, -inf
    %760 = vmax.xlane.f32.xlu0 %v759
    %v761 = vpop.xlane.xlu0 %760
    %v762 = vsub.f32 %v752, %v758
    %v763 = vsub.f32 %v754, %v761
    %v764 = vmul.f32 %v762, 1.442695
    %v765 = vpow.pop %v764
    %v766 = vmul.f32 %v763, 1.442695
    %v767 = vpow.pop %v766
    %v768 = vsel %vm142, %v765, 0.0
    %769 = vadd.xlane.f32.xlu0 %v768
    %v770 = vpop.xlane.xlu0 %769
    %v771 = vsel %vm142, %v767, 0.0
    %772 = vadd.xlane.f32.xlu0 %v771
    %v773 = vpop.xlane.xlu0 %772
    %v774 = vrcp.pop %v770
    %v775 = vrcp.pop %v773
    %v776 = vmul.f32 %v765, %v774
    %v777 = vmul.f32 %v767, %v775
    %v778 = vpack.c.bf16 %v777, %v776
    %779 = vrot.lane.b32.xlu0 %v578, 104
    %v780 = vpop.permute.xlu0 %779
    %v783 = vsel %vm142, %v778, 0
    %785 = vmatpush.bf16.msra.mxu0 0
    %786 = vmatpush.bf16.msra.mxu0 0
    %787 = vmatpush.bf16.msra.mxu0 0
    %788 = vmatpush.bf16.msra.mxu0 0
    %789 = vmatpush.bf16.msra.mxu0 0
    %790 = vmatpush.bf16.msra.mxu0 0
    %791 = vmatpush.bf16.msra.mxu0 0
    %792 = vmatpush.bf16.msra.mxu0 %v780
    %793 = vmatmul.bf16.gmra.mxu0 %v783
    %v794 = vpop.f32.mrf.mxu0
    %v795 = vadd.f32 0.0, %v794
    %v796 = vpop.f32.mrf.mxu0
    %v797 = vadd.f32 0.0, %v796
    %798 = vdwg.mxu0
    %801 = vrot.lane.b32.xlu0 %v661, 8
    %v802 = vpop.permute.xlu0 %801
    %803 = vrot.lane.b32.xlu0 %v663, 8
    %v804 = vpop.permute.xlu0 %803
    %809 = vrot.lane.b32.xlu0 %v728, 16
    %v810 = vpop.permute.xlu0 %809
    %811 = vrot.lane.b32.xlu0 %v730, 16
    %v812 = vpop.permute.xlu0 %811
    %817 = vrot.lane.b32.xlu0 %v795, 24
    %v818 = vpop.permute.xlu0 %817
    %819 = vrot.lane.b32.xlu0 %v797, 24
    %v820 = vpop.permute.xlu0 %819
    %v823 = vsel %vm121, %v592, %v802
    %v824 = vsel %vm121, %v594, %v804
    %v825 = vsel %vm142, %v823, %v810
    %v826 = vsel %vm142, %v824, %v812
    %v827 = vsel %vm416, %v825, %v818
    %v828 = vsel %vm416, %v826, %v820
    %v829 = vpack.c.bf16 %v828, %v827
    %v830 = vpack.c.bf16 %v526, %v525
    %v831 = vpack.c.bf16 %v528, %v527
    %v833 = vsel %vm66, %v829, 0
    %835 = vmatpush.bf16.msra.mxu0 0
    %836 = vmatpush.bf16.msra.mxu0 0
    %837 = vmatpush.bf16.msra.mxu0 0
    %838 = vmatpush.bf16.msra.mxu0 0
    %839 = vmatpush.bf16.msra.mxu0 0
    %840 = vmatpush.bf16.msra.mxu0 0
    %841 = vmatpush.bf16.msra.mxu0 %v831
    %842 = vmatpush.bf16.msra.mxu0 %v830
    %843 = vmatmul.bf16.gmra.mxu0 %v833
    %v844 = vpop.f32.mrf.mxu0
    %v845 = vadd.f32 %v529, %v844
    %v846 = vpop.f32.mrf.mxu0
    %v847 = vadd.f32 %v529, %v846
    %848 = vdwg.mxu0
    %v849 = vadd.f32 %v496, %v845
    %v850 = vadd.f32 %v497, %v847
    %v851 = vld [vmem:[#allocation2 + $0x1c3] ss:$0 sm:$0xff]
    %v852 = vld [vmem:[#allocation2 + $0x1c4] ss:$0 sm:$0xff]
    %v853 = vsel %vm66, %v849, 0.0
    %854 = vadd.xlane.f32.xlu0 %v853
    %v855 = vpop.xlane.xlu0 %854
    %v856 = vsel %vm66, %v850, 0.0
    %857 = vadd.xlane.f32.xlu0 %v856
    %v858 = vpop.xlane.xlu0 %857
    %v859 = vmul.f32 %v855, %v455
    %v860 = vmul.f32 %v858, %v455
    %v861 = vsub.f32 %v849, %v859
    %v862 = vsub.f32 %v850, %v860
    %v863 = vmul.f32 %v861, %v861
    %v864 = vmul.f32 %v862, %v862
    %v865 = vsel %vm66, %v863, 0.0
    %866 = vadd.xlane.f32.xlu0 %v865
    %v867 = vpop.xlane.xlu0 %866
    %v868 = vsel %vm66, %v864, 0.0
    %869 = vadd.xlane.f32.xlu0 %v868
    %v870 = vpop.xlane.xlu0 %869
    %v871 = vmul.f32 %v867, %v455
    %v872 = vmul.f32 %v870, %v455
    %v873 = vadd.f32 %v871, 1e-05
    %v874 = vadd.f32 %v872, 1e-05
    %v875 = vrsqrt.pop %v873
    %v876 = vmul.f32 %v875, %v873
    %v877 = vmul.f32 %v876, %v875
    %v878 = vmul.f32 0.5, %v877
    %v879 = vsub.f32 1.5, %v878
    %v880 = vmul.f32 %v875, %v879
    %vm881 = vweird.f32 %v873
    %vm882 = vweird.f32 %v875
    %vm883 = vmor %vm881, %vm882
    %v884 = vsel %vm883, %v875, %v880
    %v885 = vrsqrt.pop %v874
    %v886 = vmul.f32 %v885, %v874
    %v887 = vmul.f32 %v886, %v885
    %v888 = vmul.f32 0.5, %v887
    %v889 = vsub.f32 1.5, %v888
    %v890 = vmul.f32 %v885, %v889
    %vm891 = vweird.f32 %v874
    %vm892 = vweird.f32 %v885
    %vm893 = vmor %vm891, %vm892
    %v894 = vsel %vm893, %v885, %v890
    %v895 = vmul.f32 %v861, %v884
    %v896 = vmul.f32 %v862, %v894
    %v897 = vmul.f32 %v895, %v851
    %v898 = vmul.f32 %v896, %v851
    %v899 = vadd.f32 %v897, %v852
    %v900 = vadd.f32 %v898, %v852
    %v901 = vld [vmem:[#allocation2 + $0x28] sm:$0xff]
    %v902 = vld [vmem:[#allocation2 + $0x60] sm:$0xff]
    %v903 = vld [vmem:[#allocation2 + $0x98] sm:$0xff]
    %v904 = vld [vmem:[#allocation2 + $0xd0] sm:$0xff]
    %v905 = vpack.c.bf16 %v900, %v899
    %v906 = vpack.c.bf16 %v902, %v901
    %v907 = vpack.c.bf16 %v904, %v903
    %v908 = vld [vmem:[#allocation2 + $0x1e8] ss:$0 sm:$0xff]
    %v910 = vsel %vm66, %v905, 0
    %912 = vmatpush.bf16.msra.mxu0 0
    %913 = vmatpush.bf16.msra.mxu0 0
    %914 = vmatpush.bf16.msra.mxu0 0
    %915 = vmatpush.bf16.msra.mxu0 0
    %916 = vmatpush.bf16.msra.mxu0 0
    %917 = vmatpush.bf16.msra.mxu0 0
    %918 = vmatpush.bf16.msra.mxu0 %v907
    %919 = vmatpush.bf16.msra.mxu0 %v906
    %920 = vmatmul.bf16.gmra.mxu0 %v910
    %v921 = vpop.f32.mrf.mxu0
    %v922 = vadd.f32 %v908, %v921
    %v923 = vpop.f32.mrf.mxu0
    %v924 = vadd.f32 %v908, %v923
    %925 = vdwg.mxu0
    %v926 = vmax.f32 %v922, 0.0
    %v927 = vmax.f32 %v924, 0.0
    %v928 = vld [vmem:[#allocation2 + $0x30] sm:$0xff]
    %v929 = vld [vmem:[#allocation2 + $0x68] sm:$0xff]
    %v930 = vld [vmem:[#allocation2 + $0xa0] sm:$0xff]
    %v931 = vld [vmem:[#allocation2 + $0xd8] sm:$0xff]
    %v932 = vld [vmem:[#allocation2 + $0x110] sm:$0xff]
    %v933 = vld [vmem:[#allocation2 + $0x148] sm:$0xff]
    %v934 = vld [vmem:[#allocation2 + $0x180] sm:$0xff]
    %v935 = vld [vmem:[#allocation2 + $0x1b8] sm:$0xff]
    %v936 = vpack.c.bf16 %v927, %v926
    %v937 = vpack.c.bf16 %v929, %v928
    %v938 = vpack.c.bf16 %v931, %v930
    %v939 = vpack.c.bf16 %v933, %v932
    %v940 = vpack.c.bf16 %v935, %v934
    %v941 = vld [vmem:[#allocation2 + $0x1f0] ss:$0 sm:$0xff]
    %vm942 = vcmask 523264
    %v944 = vsel %vm942, %v936, 0
    %946 = vmatpush.bf16.msra.mxu0 0
    %947 = vmatpush.bf16.msra.mxu0 0
    %948 = vmatpush.bf16.msra.mxu0 0
    %949 = vmatpush.bf16.msra.mxu0 0
    %950 = vmatpush.bf16.msra.mxu0 %v940
    %951 = vmatpush.bf16.msra.mxu0 %v939
    %952 = vmatpush.bf16.msra.mxu0 %v938
    %953 = vmatpush.bf16.msra.mxu0 %v937
    %954 = vmatmul.bf16.gmra.mxu0 %v944
    %v955 = vpop.f32.mrf.mxu0
    %v956 = vadd.f32 %v941, %v955
    %v957 = vpop.f32.mrf.mxu0
    %v958 = vadd.f32 %v941, %v957
    %959 = vdwg.mxu0
    %v960 = vadd.f32 %v899, %v956
    %v961 = vadd.f32 %v900, %v958
    %v962 = vld [vmem:[#allocation2 + $0x1c5] ss:$0 sm:$0xff]
    %v963 = vld [vmem:[#allocation2 + $0x1c6] ss:$0 sm:$0xff]
    %v964 = vsel %vm66, %v960, 0.0
    %965 = vadd.xlane.f32.xlu0 %v964
    %v966 = vpop.xlane.xlu0 %965
    %v967 = vsel %vm66, %v961, 0.0
    %968 = vadd.xlane.f32.xlu0 %v967
    %v969 = vpop.xlane.xlu0 %968
    %v970 = vmul.f32 %v966, %v455
    %v971 = vmul.f32 %v969, %v455
    %v972 = vsub.f32 %v960, %v970
    %v973 = vsub.f32 %v961, %v971
    %v974 = vmul.f32 %v972, %v972
    %v975 = vmul.f32 %v973, %v973
    %v976 = vsel %vm66, %v974, 0.0
    %977 = vadd.xlane.f32.xlu0 %v976
    %v978 = vpop.xlane.xlu0 %977
    %v979 = vsel %vm66, %v975, 0.0
    %980 = vadd.xlane.f32.xlu0 %v979
    %v981 = vpop.xlane.xlu0 %980
    %v982 = vmul.f32 %v978, %v455
    %v983 = vmul.f32 %v981, %v455
    %v984 = vadd.f32 %v982, 1e-05
    %v985 = vadd.f32 %v983, 1e-05
    %v986 = vrsqrt.pop %v984
    %v987 = vmul.f32 %v986, %v984
    %v988 = vmul.f32 %v987, %v986
    %v989 = vmul.f32 0.5, %v988
    %v990 = vsub.f32 1.5, %v989
    %v991 = vmul.f32 %v986, %v990
    %vm992 = vweird.f32 %v984
    %vm993 = vweird.f32 %v986
    %vm994 = vmor %vm992, %vm993
    %v995 = vsel %vm994, %v986, %v991
    %v996 = vrsqrt.pop %v985
    %v997 = vmul.f32 %v996, %v985
    %v998 = vmul.f32 %v997, %v996
    %v999 = vmul.f32 0.5, %v998
    %v1000 = vsub.f32 1.5, %v999
    %v1001 = vmul.f32 %v996, %v1000
    %vm1002 = vweird.f32 %v985
    %vm1003 = vweird.f32 %v996
    %vm1004 = vmor %vm1002, %vm1003
    %v1005 = vsel %vm1004, %v996, %v1001
    %v1006 = vmul.f32 %v972, %v995
    %v1007 = vmul.f32 %v973, %v1005
    %v1008 = vmul.f32 %v1006, %v962
    %v1009 = vmul.f32 %v1007, %v962
    %v1010 = vadd.f32 %v1008, %v963
    %v1011 = vadd.f32 %v1009, %v963
    %1012 = vst.msk [vmem:[#allocation5] sm:$0xff] %vm66, %v1010
    %1013 = vst.msk [vmem:[#allocation5 + $0x8] sm:$0xff] %vm66, %v1011
    // Predicated region
    $region14: #{decoder_block.1} parent=1 // pred_check
      _
    $region15: #{decoder_block.1} parent=1 // pred_check_branch
      %1015 = sbr.rel (0) target = $region17
    $region16: #{decoder_block.1} parent=1 // pred_region
      %1017 = vsyncadd [#allocation4], 0
      %s1018 = sshll.u32 [#allocation5], 4
      %s1019 = int_to_ptr.vmem [resolvable:$true] %s1018
      %s1020 = sshll.u32 %s2, 4
      %s1021 = int_to_ptr.hbm [resolvable:$true] %s1020
      %1026 = dma.vmem_to_hbm [thread:$0]  %s1019, 256, %s1021, [#allocation4], 128, 128, 8
    $region17: #{decoder_block.1} parent=1 // pred_fallthru
      _
    // Predicated region
    $region18: #{decoder_block.1} parent=1 // pred_check
      _
    $region19: #{decoder_block.1} parent=1 // pred_check_branch
      %1028 = sbr.rel (0) target = $region21
    $region20: #{decoder_block.1} parent=1 // pred_region
      %1030 = dma.done [#allocation4], 256
    $region21: #{decoder_block.1} parent=1 // pred_fallthru
      _
    %1031 = vsyncpa [#allocation3], 1
    %1032 = vsyncpa [#allocation4], 1

</llo_original>
